<compile_context>
chip_gen: v7x
topology: tpu7x:2x2x1
jax: 0.10.0
libtpu: 0.0.40
codegen_flags: <defaults>
</compile_context>

<pallas_src>
import functools

import jax
import jax.numpy as jnp
from jax import lax
from jax.experimental import pallas as pl
from jax.experimental.pallas import tpu as pltpu


def _round_up(x, m):
    return ((x + m - 1) // m) * m


# ---------------------------------------------------------------------------
# Kernel 1: complex 3x3 conv as one block matmul with folded bias, fused with
# per-tile magnitude statistics for the following RadialBatchNorm.
#   x_ref: (tm, K)        K = 9 * 2*Cin   (per tap: [re channels | im channels])
#   w_ref: (K, 2*Cout)    block weight, VMEM resident
#   b_ref: (1, 2*Cout)    folded bias [b_re - b_im | b_re + b_im], VMEM resident
#   y_ref: (tm, 2*Cout)   packed output [yr | yi], single lane-dense store
#   s_ref: (1, 2, Cout)   per-tile [sum(|z|), sum(|z|^2)] per complex channel
# ---------------------------------------------------------------------------
def _make_conv_stats_kernel(c_out, tm, m_valid, need_mask):
    def kernel(x_ref, w_ref, b_ref, y_ref, s_ref):
        acc = jnp.dot(x_ref[...], w_ref[...], preferred_element_type=jnp.float32)
        y = acc + b_ref[...]
        y_ref[...] = y.astype(y_ref.dtype)

        yr = y[:, :c_out]
        yi = y[:, c_out:]
        magsq = yr * yr + yi * yi
        mag = jnp.sqrt(magsq)
        if need_mask:
            # Padded rows carry the bias value -> exclude them from the stats.
            row = (lax.broadcasted_iota(jnp.int32, (tm, 1), 0)
                   + pl.program_id(0) * tm)
            valid = row < m_valid
            mag = jnp.where(valid, mag, 0.0)
            magsq = jnp.where(valid, magsq, 0.0)
        s = jnp.concatenate(
            [jnp.sum(mag, axis=0, keepdims=True),
             jnp.sum(magsq, axis=0, keepdims=True)], axis=0)   # (2, Cout)
        s_ref[...] = s.reshape(1, 2, c_out).astype(s_ref.dtype)

    return kernel


def _block_weight(w_re, w_im):
    """(Cout, Cin, kh, kw) x2 -> block weight (kh*kw*2*Cin, 2*Cout)."""
    c_out, c_in, kh, kw = w_re.shape
    wr = jnp.transpose(w_re, (2, 3, 1, 0))        # (kh, kw, Cin, Cout)
    wi = jnp.transpose(w_im, (2, 3, 1, 0))
    top = jnp.concatenate([wr, wi], axis=-1)      # rows fed by re(x)
    bot = jnp.concatenate([-wi, wr], axis=-1)     # rows fed by im(x)
    blk = jnp.concatenate([top, bot], axis=2)     # (kh, kw, 2*Cin, 2*Cout)
    return blk.reshape(kh * kw * 2 * c_in, 2 * c_out)


def _run_complex_matmul(x_mat, w_blk, b_eff, c_out, tm_max):
    m, k = x_mat.shape
    n = w_blk.shape[1]

    # Large row tile, but keep the streamed (double-buffered) X/Y tiles well
    # inside the default scoped VMEM (v7x: 64 MiB physical / 32 MiB scoped).
    vmem_budget = 8 * 1024 * 1024
    bytes_per_row = (k + n) * x_mat.dtype.itemsize * 2
    tm_cap = max(8, (vmem_budget // bytes_per_row) // 8 * 8)
    tm = min(tm_max, tm_cap, _round_up(m, 8))

    m_pad = _round_up(m, tm)                      # ragged tail -> zero padding
    if m_pad != m:
        x_mat = jnp.pad(x_mat, ((0, m_pad - m), (0, 0)))
    num_tiles = m_pad // tm

    kernel = _make_conv_stats_kernel(c_out, tm, m, m_pad != m)
    y, stats = pl.pallas_call(
        kernel,
        out_shape=(jax.ShapeDtypeStruct((m_pad, n), x_mat.dtype),
                   jax.ShapeDtypeStruct((num_tiles, 2, c_out), jnp.float32)),
        grid_spec=pltpu.PrefetchScalarGridSpec(
            num_scalar_prefetch=0,
            grid=(num_tiles,),
            in_specs=[
                pl.BlockSpec((tm, k), lambda i: (i, 0)),
                pl.BlockSpec((k, n), lambda i: (0, 0)),   # VMEM-resident weight
                pl.BlockSpec((1, n), lambda i: (0, 0)),   # VMEM-resident bias
            ],
            out_specs=[
                pl.BlockSpec((tm, n), lambda i: (i, 0)),
                pl.BlockSpec((1, 2, c_out), lambda i: (i, 0, 0)),
            ],
        ),
        compiler_params=pltpu.CompilerParams(
            dimension_semantics=("parallel",)),
    )(x_mat, w_blk, b_eff.reshape(1, n))
    return y[:m], stats


def _complex_conv3x3(xp, w_re, w_im, b_re, b_im, stride, tm_max):
    """xp: packed channels-last (N, H, W, 2*Cin) -> ((N, Ho, Wo, 2*Cout), stats)."""
    n, h, w, two_cin = xp.shape
    c_out = w_re.shape[0]
    h_out = (h + 2 - 3) // stride + 1
    w_out = (w + 2 - 3) // stride + 1

    # im2col patch extraction (glue in plain JAX).
    x_pad = jnp.pad(xp, ((0, 0), (1, 1), (1, 1), (0, 0)))
    taps = []
    for dy in range(3):
        for dx in range(3):
            taps.append(
                x_pad[:, dy:dy + (h_out - 1) * stride + 1:stride,
                         dx:dx + (w_out - 1) * stride + 1:stride, :])
    patches = jnp.stack(taps, axis=3)             # (N, Ho, Wo, 9, 2*Cin)
    x_mat = patches.reshape(n * h_out * w_out, 9 * two_cin)

    w_blk = _block_weight(w_re, w_im)
    b_eff = jnp.concatenate([b_re - b_im, b_re + b_im])
    y, stats = _run_complex_matmul(x_mat, w_blk, b_eff, c_out, tm_max)
    return y.reshape(n, h_out, w_out, 2 * c_out), stats


# ---------------------------------------------------------------------------
# Kernel 2: RadialBatchNorm apply (per-channel affine of the magnitude, stats
# precomputed by kernel 1) fused with CReLU, on the packed [re | im] layout.
#   y_ref:  (tm, 2*C) packed conv output
#   ab_ref: (2, C)    row 0 = a = gamma/sqrt(var+eps), row 1 = b = beta - mean*a
# ---------------------------------------------------------------------------
def _radial_bn_crelu_kernel(y_ref, ab_ref, o_ref):
    y = y_ref[...]
    c = ab_ref.shape[-1]
    a = ab_ref[0:1, :]
    b = ab_ref[1:2, :]
    yr = y[:, :c]
    yi = y[:, c:]
    mag = jnp.sqrt(yr * yr + yi * yi)
    scale = (mag * a + b) / (mag + 1e-6)
    out = jnp.concatenate([yr * scale, yi * scale], axis=-1)
    o_ref[...] = jnp.maximum(out, 0.0).astype(o_ref.dtype)


def _radial_bn_crelu(yp, stats, gamma, beta, eps=1e-5, tm_max=4096):
    """yp: packed (N, H, W, 2*C); stats: (num_tiles, 2, C) partial sums."""
    n, h, w, two_c = yp.shape
    c = two_c // 2
    m = n * h * w

    # Finish the batch-statistics reduction (tiny cross-tile sum in plain JAX).
    sums = jnp.sum(stats, axis=0)                 # (2, C): [sum|z|, sum|z|^2]
    mean = sums[0] / m
    var = sums[1] / m - mean * mean               # biased, as in BN forward
    a = gamma * lax.rsqrt(var + eps)
    b = beta - mean * a
    ab = jnp.stack([a, b], axis=0)                # (2, C), VMEM resident

    y = yp.reshape(m, two_c)
    tm = min(tm_max, _round_up(m, 8))
    m_pad = _round_up(m, tm)
    if m_pad != m:
        y = jnp.pad(y, ((0, m_pad - m), (0, 0)))

    out = pl.pallas_call(
        _radial_bn_crelu_kernel,
        out_shape=jax.ShapeDtypeStruct((m_pad, two_c), y.dtype),
        grid_spec=pltpu.PrefetchScalarGridSpec(
            num_scalar_prefetch=0,
            grid=(m_pad // tm,),
            in_specs=[
                pl.BlockSpec((tm, two_c), lambda i: (i, 0)),
                pl.BlockSpec((2, c), lambda i: (0, 0)),
            ],
            out_specs=pl.BlockSpec((tm, two_c), lambda i: (i, 0)),
        ),
        compiler_params=pltpu.CompilerParams(
            dimension_semantics=("parallel",)),
    )(y, ab)
    return out[:m].reshape(n, h, w, two_c)


# ---------------------------------------------------------------------------
# Full `down` forward.
# ---------------------------------------------------------------------------
@functools.partial(jax.jit, static_argnames=("tm_max",))
def down_forward(x, params, tm_max=4096):
    """x: (N, C_in, H, W, 2) -> (out: (N, C_out, H/2, W/2, 2),
                                 down_x: (N, C_in, H/2, W/2, 2))."""
    n, c_in, h, w, _ = x.shape
    # Single NCHW2 -> packed channels-last pass; everything stays packed
    # (N, H, W, [re channels | im channels]) between layers.
    xp = jnp.transpose(x, (0, 2, 3, 4, 1)).reshape(n, h, w, 2 * c_in)

    def layer(z, conv_p, bn_p, stride):
        y, stats = _complex_conv3x3(z, *conv_p, stride=stride, tm_max=tm_max)
        return _radial_bn_crelu(y, stats, *bn_p, tm_max=tm_max)

    down_xp = layer(xp, params["down"]["conv"], params["down"]["bn"], 2)
    hp = layer(down_xp, params["dc1"]["conv"], params["dc1"]["bn"], 1)
    hp = layer(hp, params["dc2"]["conv"], params["dc2"]["bn"], 1)

    def unpack(zp):
        nn_, hh, ww, two_c = zp.shape
        z = zp.reshape(nn_, hh, ww, 2, two_c // 2)
        return jnp.transpose(z, (0, 4, 1, 2, 3))  # -> (N, C, H, W, 2)

    return unpack(hp), unpack(down_xp)


# ---------------------------------------------------------------------------
# Pure-JAX reference (mirrors the PyTorch module, CReLU activation).
# ---------------------------------------------------------------------------
def _down_ref(x, params, eps=1e-5):
    def conv2d(v, w, b, stride):
        y = lax.conv_general_dilated(
            v, w, window_strides=(stride, stride), padding=((1, 1), (1, 1)),
            dimension_numbers=("NCHW", "OIHW", "NCHW"),
            precision=lax.Precision.HIGHEST)
        return y + b[None, :, None, None]

    def complex_conv(z, p, stride):
        w_re, w_im, b_re, b_im = p
        zr, zi = z[..., 0], z[..., 1]
        real = conv2d(zr, w_re, b_re, stride) - conv2d(zi, w_im, b_im, stride)
        imag = conv2d(zi, w_re, b_re, stride) + conv2d(zr, w_im, b_im, stride)
        return jnp.stack([real, imag], axis=-1)

    def radial_bn_crelu(z, p):
        gamma, beta = p
        zr, zi = z[..., 0], z[..., 1]
        mag = jnp.sqrt(zr * zr + zi * zi)
        mean = jnp.mean(mag, axis=(0, 2, 3), keepdims=True)
        var = jnp.var(mag, axis=(0, 2, 3), keepdims=True)
        mag_hat = (mag - mean) / jnp.sqrt(var + eps) * gamma[None, :, None, None] \
            + beta[None, :, None, None]
        scale = mag_hat / (mag + 1e-6)
        return jnp.stack([jnp.maximum(zr * scale, 0.0),
                          jnp.maximum(zi * scale, 0.0)], axis=-1)

    down_x = radial_bn_crelu(complex_conv(x, params["down"]["conv"], 2),
                             params["down"]["bn"])
    h = radial_bn_crelu(complex_conv(down_x, params["dc1"]["conv"], 1),
                        params["dc1"]["bn"])
    h = radial_bn_crelu(complex_conv(h, params["dc2"]["conv"], 1),
                        params["dc2"]["bn"])
    return h, down_x


if __name__ == "__main__":
    key = jax.random.PRNGKey(0)
    n, in_ch, out_ch, h, w = 2, 4, 8, 16, 16

    def conv_params(k, cin, cout):
        k1, k2, k3, k4 = jax.random.split(k, 4)
        bound = 1.0 / (cin * 9) ** 0.5
        shape = (cout, cin, 3, 3)
        return (jax.random.uniform(k1, shape, jnp.float32, -bound, bound),
                jax.random.uniform(k2, shape, jnp.float32, -bound, bound),
                jax.random.uniform(k3, (cout,), jnp.float32, -bound, bound),
                jax.random.uniform(k4, (cout,), jnp.float32, -bound, bound))

    def bn_params(k, c):
        k1, k2 = jax.random.split(k)
        return (jax.random.uniform(k1, (c,), jnp.float32, 0.5, 1.5),
                jax.random.uniform(k2, (c,), jnp.float32, -0.2, 0.2))

    kx, ka, kb, kc, kd, ke, kf = jax.random.split(key, 7)
    x = jax.random.normal(kx, (n, in_ch, h, w, 2), dtype=jnp.float32)
    params = {
        "down": {"conv": conv_params(ka, in_ch, in_ch), "bn": bn_params(kb, in_ch)},
        "dc1": {"conv": conv_params(kc, in_ch, out_ch), "bn": bn_params(kd, out_ch)},
        "dc2": {"conv": conv_params(ke, out_ch, out_ch), "bn": bn_params(kf, out_ch)},
    }

    out, down_x = down_forward(x, params)
    out = jax.block_until_ready(out)
    down_x = jax.block_until_ready(down_x)

    ref_out, ref_down = _down_ref(x, params)

    assert out.shape == (n, out_ch, h // 2, w // 2, 2), out.shape
    assert down_x.shape == (n, in_ch, h // 2, w // 2, 2), down_x.shape
    assert jnp.allclose(down_x, ref_down, atol=1e-3, rtol=1e-3), \
        float(jnp.max(jnp.abs(down_x - ref_down)))
    assert jnp.allclose(out, ref_out, atol=1e-3, rtol=1e-3), \
        float(jnp.max(jnp.abs(out - ref_out)))

    print("KERNEL_OK")
</pallas_src>

<mosaic_0001>
module attributes {stable_mosaic.version = 11 : i64} {
  func.func @kernel(%arg0: i32, %arg1: memref<128x72xf32, #tpu.memory_space<vmem>>, %arg2: memref<72x8xf32, #tpu.memory_space<vmem>>, %arg3: memref<1x8xf32, #tpu.memory_space<vmem>>, %arg4: memref<128x8xf32, #tpu.memory_space<vmem>>, %arg5: memref<1x2x4xf32, #tpu.memory_space<vmem>>) attributes {dimension_semantics = [#tpu.dimension_semantics<parallel>], iteration_bounds = array<i64: 1>, scalar_prefetch = 0 : i64, scratch_operands = 0 : i64, tpu.core_type = #tpu.core_type<tc>, window_params = [{transform_indices = @transform_0, window_bounds = array<i64: 128, 72>}, {pipeline_mode = #tpu.pipeline_mode<synchronous>, transform_indices = @transform_1, window_bounds = array<i64: 72, 8>}, {pipeline_mode = #tpu.pipeline_mode<synchronous>, transform_indices = @transform_2, window_bounds = array<i64: 1, 8>}, {transform_indices = @transform_3, window_bounds = array<i64: 128, 8>}, {transform_indices = @transform_4, window_bounds = array<i64: 1, 2, 4>}]} {
    %c0 = arith.constant 0 : index
    %c0_0 = arith.constant 0 : index
    %0 = vector.load %arg1[%c0, %c0_0] : memref<128x72xf32, #tpu.memory_space<vmem>>, vector<128x72xf32>
    %c0_1 = arith.constant 0 : index
    %c0_2 = arith.constant 0 : index
    %1 = vector.load %arg2[%c0_1, %c0_2] : memref<72x8xf32, #tpu.memory_space<vmem>>, vector<72x8xf32>
    %cst = arith.constant dense<0.000000e+00> : vector<128x8xf32>
    %2 = tpu.matmul %0, %1, %cst {dimension_numbers = #tpu.dot_dimension_numbers<[1], [0], [0], [1], [0, 0, 1, 1], [], []>} : vector<128x72xf32>, vector<72x8xf32>, vector<128x8xf32> -> vector<128x8xf32>
    %c0_3 = arith.constant 0 : index
    %c0_4 = arith.constant 0 : index
    %3 = vector.load %arg3[%c0_3, %c0_4] : memref<1x8xf32, #tpu.memory_space<vmem>>, vector<1x8xf32>
    %4 = vector.broadcast %3 : vector<1x8xf32> to vector<128x8xf32>
    %5 = arith.addf %2, %4 : vector<128x8xf32>
    %c0_5 = arith.constant 0 : index
    %c0_6 = arith.constant 0 : index
    %6 = vector.load %arg4[%c0_5, %c0_6] : memref<128x8xf32, #tpu.memory_space<vmem>>, vector<128x8xf32>
    tpu.vector_store %arg4[%c0_5, %c0_6], %5 {strides = array<i32>} : memref<128x8xf32, #tpu.memory_space<vmem>>, vector<128x8xf32>,
    %7 = vector.extract_strided_slice %5 {offsets = [0, 0], sizes = [128, 4], strides = [1, 1]} : vector<128x8xf32> to vector<128x4xf32>
    %8 = vector.extract_strided_slice %5 {offsets = [0, 4], sizes = [128, 4], strides = [1, 1]} : vector<128x8xf32> to vector<128x4xf32>
    %9 = arith.mulf %7, %7 : vector<128x4xf32>
    %10 = arith.mulf %8, %8 : vector<128x4xf32>
    %11 = arith.addf %9, %10 : vector<128x4xf32>
    %12 = math.sqrt %11 : vector<128x4xf32>
    %cst_7 = arith.constant dense<0.000000e+00> : vector<4xf32>
    %13 = vector.multi_reduction <add>, %12, %cst_7 [0] : vector<128x4xf32> to vector<4xf32>
    %14 = vector.shape_cast %13 : vector<4xf32> to vector<1x4xf32>
    %cst_8 = arith.constant dense<0.000000e+00> : vector<4xf32>
    %15 = vector.multi_reduction <add>, %11, %cst_8 [0] : vector<128x4xf32> to vector<4xf32>
    %16 = vector.shape_cast %15 : vector<4xf32> to vector<1x4xf32>
    %17 = tpu.concatenate %14, %16 in 0 : vector<1x4xf32>, vector<1x4xf32> -> vector<2x4xf32>
    %18 = vector.shape_cast %17 : vector<2x4xf32> to vector<1x2x4xf32>
    %c0_9 = arith.constant 0 : index
    %c0_10 = arith.constant 0 : index
    %c0_11 = arith.constant 0 : index
    %19 = vector.load %arg5[%c0_9, %c0_10, %c0_11] : memref<1x2x4xf32, #tpu.memory_space<vmem>>, vector<1x2x4xf32>
    tpu.vector_store %arg5[%c0_9, %c0_10, %c0_11], %18 {strides = array<i32>} : memref<1x2x4xf32, #tpu.memory_space<vmem>>, vector<1x2x4xf32>,
    return
  }
  func.func @transform_0(%arg0: i32) -> (i32, i32) {
    %c0_i32 = arith.constant 0 : i32
    %c0_i32_0 = arith.constant 0 : i32
    return %arg0, %c0_i32 : i32, i32
  }
  func.func @transform_1(%arg0: i32) -> (i32, i32) {
    %c0_i32 = arith.constant 0 : i32
    %c0_i32_0 = arith.constant 0 : i32
    %c0_i32_1 = arith.constant 0 : i32
    return %c0_i32, %c0_i32_0 : i32, i32
  }
  func.func @transform_2(%arg0: i32) -> (i32, i32) {
    %c0_i32 = arith.constant 0 : i32
    %c0_i32_0 = arith.constant 0 : i32
    %c0_i32_1 = arith.constant 0 : i32
    return %c0_i32, %c0_i32_0 : i32, i32
  }
  func.func @transform_3(%arg0: i32) -> (i32, i32) {
    %c0_i32 = arith.constant 0 : i32
    %c0_i32_0 = arith.constant 0 : i32
    return %arg0, %c0_i32 : i32, i32
  }
  func.func @transform_4(%arg0: i32) -> (i32, i32, i32) {
    %c0_i32 = arith.constant 0 : i32
    %c0_i32_0 = arith.constant 0 : i32
    %c0_i32_1 = arith.constant 0 : i32
    return %arg0, %c0_i32, %c0_i32_0 : i32, i32, i32
  }
}

module attributes {stable_mosaic.version = 11 : i64} {
  func.func @_radial_bn_crelu_kernel(%arg0: i32, %arg1: memref<128x8xf32, #tpu.memory_space<vmem>>, %arg2: memref<2x4xf32, #tpu.memory_space<vmem>>, %arg3: memref<128x8xf32, #tpu.memory_space<vmem>>) attributes {dimension_semantics = [#tpu.dimension_semantics<parallel>], iteration_bounds = array<i64: 1>, scalar_prefetch = 0 : i64, scratch_operands = 0 : i64, tpu.core_type = #tpu.core_type<tc>, window_params = [{transform_indices = @transform_0, window_bounds = array<i64: 128, 8>}, {pipeline_mode = #tpu.pipeline_mode<synchronous>, transform_indices = @transform_1, window_bounds = array<i64: 2, 4>}, {transform_indices = @transform_2, window_bounds = array<i64: 128, 8>}]} {
    %c0 = arith.constant 0 : index
    %c0_0 = arith.constant 0 : index
    %0 = vector.load %arg1[%c0, %c0_0] : memref<128x8xf32, #tpu.memory_space<vmem>>, vector<128x8xf32>
    %c0_1 = arith.constant 0 : index
    %c0_2 = arith.constant 0 : index
    %1 = vector.load %arg2[%c0_1, %c0_2] : memref<2x4xf32, #tpu.memory_space<vmem>>, vector<1x4xf32>
    %c1 = arith.constant 1 : index
    %c0_3 = arith.constant 0 : index
    %2 = vector.load %arg2[%c1, %c0_3] : memref<2x4xf32, #tpu.memory_space<vmem>>, vector<1x4xf32>
    %3 = vector.extract_strided_slice %0 {offsets = [0, 0], sizes = [128, 4], strides = [1, 1]} : vector<128x8xf32> to vector<128x4xf32>
    %4 = vector.extract_strided_slice %0 {offsets = [0, 4], sizes = [128, 4], strides = [1, 1]} : vector<128x8xf32> to vector<128x4xf32>
    %5 = arith.mulf %3, %3 : vector<128x4xf32>
    %6 = arith.mulf %4, %4 : vector<128x4xf32>
    %7 = arith.addf %5, %6 : vector<128x4xf32>
    %8 = math.sqrt %7 : vector<128x4xf32>
    %9 = vector.broadcast %1 : vector<1x4xf32> to vector<128x4xf32>
    %10 = arith.mulf %8, %9 : vector<128x4xf32>
    %11 = vector.broadcast %2 : vector<1x4xf32> to vector<128x4xf32>
    %12 = arith.addf %10, %11 : vector<128x4xf32>
    %cst = arith.constant 9.99999997E-7 : f32
    %13 = vector.broadcast %cst : f32 to vector<128x4xf32>
    %14 = arith.addf %8, %13 : vector<128x4xf32>
    %15 = arith.divf %12, %14 : vector<128x4xf32>
    %16 = arith.mulf %3, %15 : vector<128x4xf32>
    %17 = arith.mulf %4, %15 : vector<128x4xf32>
    %18 = tpu.concatenate %16, %17 in 1 : vector<128x4xf32>, vector<128x4xf32> -> vector<128x8xf32>
    %cst_4 = arith.constant 0.000000e+00 : f32
    %19 = vector.broadcast %cst_4 : f32 to vector<128x8xf32>
    %20 = arith.maximumf %18, %19 : vector<128x8xf32>
    %c0_5 = arith.constant 0 : index
    %c0_6 = arith.constant 0 : index
    %21 = vector.load %arg3[%c0_5, %c0_6] : memref<128x8xf32, #tpu.memory_space<vmem>>, vector<128x8xf32>
    tpu.vector_store %arg3[%c0_5, %c0_6], %20 {strides = array<i32>} : memref<128x8xf32, #tpu.memory_space<vmem>>, vector<128x8xf32>,
    return
  }
  func.func @transform_0(%arg0: i32) -> (i32, i32) {
    %c0_i32 = arith.constant 0 : i32
    %c0_i32_0 = arith.constant 0 : i32
    return %arg0, %c0_i32 : i32, i32
  }
  func.func @transform_1(%arg0: i32) -> (i32, i32) {
    %c0_i32 = arith.constant 0 : i32
    %c0_i32_0 = arith.constant 0 : i32
    %c0_i32_1 = arith.constant 0 : i32
    return %c0_i32, %c0_i32_0 : i32, i32
  }
  func.func @transform_2(%arg0: i32) -> (i32, i32) {
    %c0_i32 = arith.constant 0 : i32
    %c0_i32_0 = arith.constant 0 : i32
    return %arg0, %c0_i32 : i32, i32
  }
}

module attributes {stable_mosaic.version = 11 : i64} {
  func.func @_radial_bn_crelu_kernel(%arg0: i32, %arg1: memref<128x16xf32, #tpu.memory_space<vmem>>, %arg2: memref<2x8xf32, #tpu.memory_space<vmem>>, %arg3: memref<128x16xf32, #tpu.memory_space<vmem>>) attributes {dimension_semantics = [#tpu.dimension_semantics<parallel>], iteration_bounds = array<i64: 1>, scalar_prefetch = 0 : i64, scratch_operands = 0 : i64, tpu.core_type = #tpu.core_type<tc>, window_params = [{transform_indices = @transform_0, window_bounds = array<i64: 128, 16>}, {pipeline_mode = #tpu.pipeline_mode<synchronous>, transform_indices = @transform_1, window_bounds = array<i64: 2, 8>}, {transform_indices = @transform_2, window_bounds = array<i64: 128, 16>}]} {
    %c0 = arith.constant 0 : index
    %c0_0 = arith.constant 0 : index
    %0 = vector.load %arg1[%c0, %c0_0] : memref<128x16xf32, #tpu.memory_space<vmem>>, vector<128x16xf32>
    %c0_1 = arith.constant 0 : index
    %c0_2 = arith.constant 0 : index
    %1 = vector.load %arg2[%c0_1, %c0_2] : memref<2x8xf32, #tpu.memory_space<vmem>>, vector<1x8xf32>
    %c1 = arith.constant 1 : index
    %c0_3 = arith.constant 0 : index
    %2 = vector.load %arg2[%c1, %c0_3] : memref<2x8xf32, #tpu.memory_space<vmem>>, vector<1x8xf32>
    %3 = vector.extract_strided_slice %0 {offsets = [0, 0], sizes = [128, 8], strides = [1, 1]} : vector<128x16xf32> to vector<128x8xf32>
    %4 = vector.extract_strided_slice %0 {offsets = [0, 8], sizes = [128, 8], strides = [1, 1]} : vector<128x16xf32> to vector<128x8xf32>
    %5 = arith.mulf %3, %3 : vector<128x8xf32>
    %6 = arith.mulf %4, %4 : vector<128x8xf32>
    %7 = arith.addf %5, %6 : vector<128x8xf32>
    %8 = math.sqrt %7 : vector<128x8xf32>
    %9 = vector.broadcast %1 : vector<1x8xf32> to vector<128x8xf32>
    %10 = arith.mulf %8, %9 : vector<128x8xf32>
    %11 = vector.broadcast %2 : vector<1x8xf32> to vector<128x8xf32>
    %12 = arith.addf %10, %11 : vector<128x8xf32>
    %cst = arith.constant 9.99999997E-7 : f32
    %13 = vector.broadcast %cst : f32 to vector<128x8xf32>
    %14 = arith.addf %8, %13 : vector<128x8xf32>
    %15 = arith.divf %12, %14 : vector<128x8xf32>
    %16 = arith.mulf %3, %15 : vector<128x8xf32>
    %17 = arith.mulf %4, %15 : vector<128x8xf32>
    %18 = tpu.concatenate %16, %17 in 1 : vector<128x8xf32>, vector<128x8xf32> -> vector<128x16xf32>
    %cst_4 = arith.constant 0.000000e+00 : f32
    %19 = vector.broadcast %cst_4 : f32 to vector<128x16xf32>
    %20 = arith.maximumf %18, %19 : vector<128x16xf32>
    %c0_5 = arith.constant 0 : index
    %c0_6 = arith.constant 0 : index
    %21 = vector.load %arg3[%c0_5, %c0_6] : memref<128x16xf32, #tpu.memory_space<vmem>>, vector<128x16xf32>
    tpu.vector_store %arg3[%c0_5, %c0_6], %20 {strides = array<i32>} : memref<128x16xf32, #tpu.memory_space<vmem>>, vector<128x16xf32>,
    return
  }
  func.func @transform_0(%arg0: i32) -> (i32, i32) {
    %c0_i32 = arith.constant 0 : i32
    %c0_i32_0 = arith.constant 0 : i32
    return %arg0, %c0_i32 : i32, i32
  }
  func.func @transform_1(%arg0: i32) -> (i32, i32) {
    %c0_i32 = arith.constant 0 : i32
    %c0_i32_0 = arith.constant 0 : i32
    %c0_i32_1 = arith.constant 0 : i32
    return %c0_i32, %c0_i32_0 : i32, i32
  }
  func.func @transform_2(%arg0: i32) -> (i32, i32) {
    %c0_i32 = arith.constant 0 : i32
    %c0_i32_0 = arith.constant 0 : i32
    return %arg0, %c0_i32 : i32, i32
  }
}

module attributes {stable_mosaic.version = 11 : i64} {
  func.func @kernel(%arg0: i32, %arg1: memref<128x72xf32, #tpu.memory_space<vmem>>, %arg2: memref<72x16xf32, #tpu.memory_space<vmem>>, %arg3: memref<1x16xf32, #tpu.memory_space<vmem>>, %arg4: memref<128x16xf32, #tpu.memory_space<vmem>>, %arg5: memref<1x2x8xf32, #tpu.memory_space<vmem>>) attributes {dimension_semantics = [#tpu.dimension_semantics<parallel>], iteration_bounds = array<i64: 1>, scalar_prefetch = 0 : i64, scratch_operands = 0 : i64, tpu.core_type = #tpu.core_type<tc>, window_params = [{transform_indices = @transform_0, window_bounds = array<i64: 128, 72>}, {pipeline_mode = #tpu.pipeline_mode<synchronous>, transform_indices = @transform_1, window_bounds = array<i64: 72, 16>}, {pipeline_mode = #tpu.pipeline_mode<synchronous>, transform_indices = @transform_2, window_bounds = array<i64: 1, 16>}, {transform_indices = @transform_3, window_bounds = array<i64: 128, 16>}, {transform_indices = @transform_4, window_bounds = array<i64: 1, 2, 8>}]} {
    %c0 = arith.constant 0 : index
    %c0_0 = arith.constant 0 : index
    %0 = vector.load %arg1[%c0, %c0_0] : memref<128x72xf32, #tpu.memory_space<vmem>>, vector<128x72xf32>
    %c0_1 = arith.constant 0 : index
    %c0_2 = arith.constant 0 : index
    %1 = vector.load %arg2[%c0_1, %c0_2] : memref<72x16xf32, #tpu.memory_space<vmem>>, vector<72x16xf32>
    %cst = arith.constant dense<0.000000e+00> : vector<128x16xf32>
    %2 = tpu.matmul %0, %1, %cst {dimension_numbers = #tpu.dot_dimension_numbers<[1], [0], [0], [1], [0, 0, 1, 1], [], []>} : vector<128x72xf32>, vector<72x16xf32>, vector<128x16xf32> -> vector<128x16xf32>
    %c0_3 = arith.constant 0 : index
    %c0_4 = arith.constant 0 : index
    %3 = vector.load %arg3[%c0_3, %c0_4] : memref<1x16xf32, #tpu.memory_space<vmem>>, vector<1x16xf32>
    %4 = vector.broadcast %3 : vector<1x16xf32> to vector<128x16xf32>
    %5 = arith.addf %2, %4 : vector<128x16xf32>
    %c0_5 = arith.constant 0 : index
    %c0_6 = arith.constant 0 : index
    %6 = vector.load %arg4[%c0_5, %c0_6] : memref<128x16xf32, #tpu.memory_space<vmem>>, vector<128x16xf32>
    tpu.vector_store %arg4[%c0_5, %c0_6], %5 {strides = array<i32>} : memref<128x16xf32, #tpu.memory_space<vmem>>, vector<128x16xf32>,
    %7 = vector.extract_strided_slice %5 {offsets = [0, 0], sizes = [128, 8], strides = [1, 1]} : vector<128x16xf32> to vector<128x8xf32>
    %8 = vector.extract_strided_slice %5 {offsets = [0, 8], sizes = [128, 8], strides = [1, 1]} : vector<128x16xf32> to vector<128x8xf32>
    %9 = arith.mulf %7, %7 : vector<128x8xf32>
    %10 = arith.mulf %8, %8 : vector<128x8xf32>
    %11 = arith.addf %9, %10 : vector<128x8xf32>
    %12 = math.sqrt %11 : vector<128x8xf32>
    %cst_7 = arith.constant dense<0.000000e+00> : vector<8xf32>
    %13 = vector.multi_reduction <add>, %12, %cst_7 [0] : vector<128x8xf32> to vector<8xf32>
    %14 = vector.shape_cast %13 : vector<8xf32> to vector<1x8xf32>
    %cst_8 = arith.constant dense<0.000000e+00> : vector<8xf32>
    %15 = vector.multi_reduction <add>, %11, %cst_8 [0] : vector<128x8xf32> to vector<8xf32>
    %16 = vector.shape_cast %15 : vector<8xf32> to vector<1x8xf32>
    %17 = tpu.concatenate %14, %16 in 0 : vector<1x8xf32>, vector<1x8xf32> -> vector<2x8xf32>
    %18 = vector.shape_cast %17 : vector<2x8xf32> to vector<1x2x8xf32>
    %c0_9 = arith.constant 0 : index
    %c0_10 = arith.constant 0 : index
    %c0_11 = arith.constant 0 : index
    %19 = vector.load %arg5[%c0_9, %c0_10, %c0_11] : memref<1x2x8xf32, #tpu.memory_space<vmem>>, vector<1x2x8xf32>
    tpu.vector_store %arg5[%c0_9, %c0_10, %c0_11], %18 {strides = array<i32>} : memref<1x2x8xf32, #tpu.memory_space<vmem>>, vector<1x2x8xf32>,
    return
  }
  func.func @transform_0(%arg0: i32) -> (i32, i32) {
    %c0_i32 = arith.constant 0 : i32
    %c0_i32_0 = arith.constant 0 : i32
    return %arg0, %c0_i32 : i32, i32
  }
  func.func @transform_1(%arg0: i32) -> (i32, i32) {
    %c0_i32 = arith.constant 0 : i32
    %c0_i32_0 = arith.constant 0 : i32
    %c0_i32_1 = arith.constant 0 : i32
    return %c0_i32, %c0_i32_0 : i32, i32
  }
  func.func @transform_2(%arg0: i32) -> (i32, i32) {
    %c0_i32 = arith.constant 0 : i32
    %c0_i32_0 = arith.constant 0 : i32
    %c0_i32_1 = arith.constant 0 : i32
    return %c0_i32, %c0_i32_0 : i32, i32
  }
  func.func @transform_3(%arg0: i32) -> (i32, i32) {
    %c0_i32 = arith.constant 0 : i32
    %c0_i32_0 = arith.constant 0 : i32
    return %arg0, %c0_i32 : i32, i32
  }
  func.func @transform_4(%arg0: i32) -> (i32, i32, i32) {
    %c0_i32 = arith.constant 0 : i32
    %c0_i32_0 = arith.constant 0 : i32
    %c0_i32_1 = arith.constant 0 : i32
    return %arg0, %c0_i32, %c0_i32_0 : i32, i32, i32
  }
}

module attributes {stable_mosaic.version = 11 : i64} {
  func.func @kernel(%arg0: i32, %arg1: memref<128x144xf32, #tpu.memory_space<vmem>>, %arg2: memref<144x16xf32, #tpu.memory_space<vmem>>, %arg3: memref<1x16xf32, #tpu.memory_space<vmem>>, %arg4: memref<128x16xf32, #tpu.memory_space<vmem>>, %arg5: memref<1x2x8xf32, #tpu.memory_space<vmem>>) attributes {dimension_semantics = [#tpu.dimension_semantics<parallel>], iteration_bounds = array<i64: 1>, scalar_prefetch = 0 : i64, scratch_operands = 0 : i64, tpu.core_type = #tpu.core_type<tc>, window_params = [{transform_indices = @transform_0, window_bounds = array<i64: 128, 144>}, {pipeline_mode = #tpu.pipeline_mode<synchronous>, transform_indices = @transform_1, window_bounds = array<i64: 144, 16>}, {pipeline_mode = #tpu.pipeline_mode<synchronous>, transform_indices = @transform_2, window_bounds = array<i64: 1, 16>}, {transform_indices = @transform_3, window_bounds = array<i64: 128, 16>}, {transform_indices = @transform_4, window_bounds = array<i64: 1, 2, 8>}]} {
    %c0 = arith.constant 0 : index
    %c0_0 = arith.constant 0 : index
    %0 = vector.load %arg1[%c0, %c0_0] : memref<128x144xf32, #tpu.memory_space<vmem>>, vector<128x144xf32>
    %c0_1 = arith.constant 0 : index
    %c0_2 = arith.constant 0 : index
    %1 = vector.load %arg2[%c0_1, %c0_2] : memref<144x16xf32, #tpu.memory_space<vmem>>, vector<144x16xf32>
    %cst = arith.constant dense<0.000000e+00> : vector<128x16xf32>
    %2 = tpu.matmul %0, %1, %cst {dimension_numbers = #tpu.dot_dimension_numbers<[1], [0], [0], [1], [0, 0, 1, 1], [], []>} : vector<128x144xf32>, vector<144x16xf32>, vector<128x16xf32> -> vector<128x16xf32>
    %c0_3 = arith.constant 0 : index
    %c0_4 = arith.constant 0 : index
    %3 = vector.load %arg3[%c0_3, %c0_4] : memref<1x16xf32, #tpu.memory_space<vmem>>, vector<1x16xf32>
    %4 = vector.broadcast %3 : vector<1x16xf32> to vector<128x16xf32>
    %5 = arith.addf %2, %4 : vector<128x16xf32>
    %c0_5 = arith.constant 0 : index
    %c0_6 = arith.constant 0 : index
    %6 = vector.load %arg4[%c0_5, %c0_6] : memref<128x16xf32, #tpu.memory_space<vmem>>, vector<128x16xf32>
    tpu.vector_store %arg4[%c0_5, %c0_6], %5 {strides = array<i32>} : memref<128x16xf32, #tpu.memory_space<vmem>>, vector<128x16xf32>,
    %7 = vector.extract_strided_slice %5 {offsets = [0, 0], sizes = [128, 8], strides = [1, 1]} : vector<128x16xf32> to vector<128x8xf32>
    %8 = vector.extract_strided_slice %5 {offsets = [0, 8], sizes = [128, 8], strides = [1, 1]} : vector<128x16xf32> to vector<128x8xf32>
    %9 = arith.mulf %7, %7 : vector<128x8xf32>
    %10 = arith.mulf %8, %8 : vector<128x8xf32>
    %11 = arith.addf %9, %10 : vector<128x8xf32>
    %12 = math.sqrt %11 : vector<128x8xf32>
    %cst_7 = arith.constant dense<0.000000e+00> : vector<8xf32>
    %13 = vector.multi_reduction <add>, %12, %cst_7 [0] : vector<128x8xf32> to vector<8xf32>
    %14 = vector.shape_cast %13 : vector<8xf32> to vector<1x8xf32>
    %cst_8 = arith.constant dense<0.000000e+00> : vector<8xf32>
    %15 = vector.multi_reduction <add>, %11, %cst_8 [0] : vector<128x8xf32> to vector<8xf32>
    %16 = vector.shape_cast %15 : vector<8xf32> to vector<1x8xf32>
    %17 = tpu.concatenate %14, %16 in 0 : vector<1x8xf32>, vector<1x8xf32> -> vector<2x8xf32>
    %18 = vector.shape_cast %17 : vector<2x8xf32> to vector<1x2x8xf32>
    %c0_9 = arith.constant 0 : index
    %c0_10 = arith.constant 0 : index
    %c0_11 = arith.constant 0 : index
    %19 = vector.load %arg5[%c0_9, %c0_10, %c0_11] : memref<1x2x8xf32, #tpu.memory_space<vmem>>, vector<1x2x8xf32>
    tpu.vector_store %arg5[%c0_9, %c0_10, %c0_11], %18 {strides = array<i32>} : memref<1x2x8xf32, #tpu.memory_space<vmem>>, vector<1x2x8xf32>,
    return
  }
  func.func @transform_0(%arg0: i32) -> (i32, i32) {
    %c0_i32 = arith.constant 0 : i32
    %c0_i32_0 = arith.constant 0 : i32
    return %arg0, %c0_i32 : i32, i32
  }
  func.func @transform_1(%arg0: i32) -> (i32, i32) {
    %c0_i32 = arith.constant 0 : i32
    %c0_i32_0 = arith.constant 0 : i32
    %c0_i32_1 = arith.constant 0 : i32
    return %c0_i32, %c0_i32_0 : i32, i32
  }
  func.func @transform_2(%arg0: i32) -> (i32, i32) {
    %c0_i32 = arith.constant 0 : i32
    %c0_i32_0 = arith.constant 0 : i32
    %c0_i32_1 = arith.constant 0 : i32
    return %c0_i32, %c0_i32_0 : i32, i32
  }
  func.func @transform_3(%arg0: i32) -> (i32, i32) {
    %c0_i32 = arith.constant 0 : i32
    %c0_i32_0 = arith.constant 0 : i32
    return %arg0, %c0_i32 : i32, i32
  }
  func.func @transform_4(%arg0: i32) -> (i32, i32, i32) {
    %c0_i32 = arith.constant 0 : i32
    %c0_i32_0 = arith.constant 0 : i32
    %c0_i32_1 = arith.constant 0 : i32
    return %arg0, %c0_i32, %c0_i32_0 : i32, i32, i32
  }
}

</mosaic_0001>

<llo_original>
// kernel: down_forward.7
$region0: #{down_forward.7}
  #allocation0 [shape = 'u32[]', space=smem, size = 0x4, offset = 0x4, fixed_abs, tag = 'smem constant byte address 0x4 - core index']
  #allocation1 [shape = 'u32[144,128]{1,0:T(1,128)}', space=vmem, size = 0x12000, scoped, tag = 'internal scratch']
  %s0 = inlined_call_operand.vmem [shape: f32[128,8], index: 0, kind: input, shape index: {}]
  %s1 = inlined_call_operand.vmem [shape: f32[2,4], index: 1, kind: input, shape index: {}]
  %s2 = inlined_call_operand.vmem [shape: f32[128,8], index: 2, kind: output, shape index: {}]
  %s3 = sld [smem:[#allocation0]]
  $region18: #{down_forward.7} parent=0
    _
  %s5 = ssub.s32 1, %s3
  %s6 = scalar_select 0, %s5, %s3
  // Predicated region
  $region2: #{down_forward.7} parent=0 // pred_check
    _
  $region3: #{down_forward.7} parent=0 // pred_check_branch
    %8 = sbr.rel (0) target = $region5
  $region4: #{down_forward.7} parent=0 // pred_region
    _
  $region5: #{down_forward.7} parent=0 // pred_fallthru
    _
  // Predicated region
  $region6: #{down_forward.7} parent=0 // pred_check
    _
  $region7: #{down_forward.7} parent=0 // pred_check_branch
    %10 = sbr.rel (0) target = $region9
  $region8: #{down_forward.7} parent=0 // pred_region
    _
  $region9: #{down_forward.7} parent=0 // pred_fallthru
    _
  %v11 = vld [vmem:[%s0] sm:$0xff]
  %v12 = vld [vmem:[%s0 + $0x8] sm:$0xff]
  %v13 = vld [vmem:[%s0 + $0x10] sm:$0xff]
  %v14 = vld [vmem:[%s0 + $0x18] sm:$0xff]
  %v15 = vld [vmem:[%s0 + $0x20] sm:$0xff]
  %v16 = vld [vmem:[%s0 + $0x28] sm:$0xff]
  %v17 = vld [vmem:[%s0 + $0x30] sm:$0xff]
  %v18 = vld [vmem:[%s0 + $0x38] sm:$0xff]
  %v19 = vld [vmem:[%s0 + $0x40] sm:$0xff]
  %v20 = vld [vmem:[%s0 + $0x48] sm:$0xff]
  %v21 = vld [vmem:[%s0 + $0x50] sm:$0xff]
  %v22 = vld [vmem:[%s0 + $0x58] sm:$0xff]
  %v23 = vld [vmem:[%s0 + $0x60] sm:$0xff]
  %v24 = vld [vmem:[%s0 + $0x68] sm:$0xff]
  %v25 = vld [vmem:[%s0 + $0x70] sm:$0xff]
  %v26 = vld [vmem:[%s0 + $0x78] sm:$0xff]
  %v27 = vld [vmem:[%s1] sm:$0x1]
  %v28 = vld [vmem:[%s1 + $0x1] sm:$0x1]
  %v29 = vmul.f32 %v11, %v11
  %v30 = vmul.f32 %v12, %v12
  %v31 = vmul.f32 %v13, %v13
  %v32 = vmul.f32 %v14, %v14
  %v33 = vmul.f32 %v15, %v15
  %v34 = vmul.f32 %v16, %v16
  %v35 = vmul.f32 %v17, %v17
  %v36 = vmul.f32 %v18, %v18
  %v37 = vmul.f32 %v19, %v19
  %v38 = vmul.f32 %v20, %v20
  %v39 = vmul.f32 %v21, %v21
  %v40 = vmul.f32 %v22, %v22
  %v41 = vmul.f32 %v23, %v23
  %v42 = vmul.f32 %v24, %v24
  %v43 = vmul.f32 %v25, %v25
  %v44 = vmul.f32 %v26, %v26
  %61 = vrot.lane.b32.xlu0 %v29, 124
  %v62 = vpop.permute.xlu0 %61
  %63 = vrot.lane.b32.xlu0 %v30, 124
  %v64 = vpop.permute.xlu0 %63
  %65 = vrot.lane.b32.xlu0 %v31, 124
  %v66 = vpop.permute.xlu0 %65
  %67 = vrot.lane.b32.xlu0 %v32, 124
  %v68 = vpop.permute.xlu0 %67
  %69 = vrot.lane.b32.xlu0 %v33, 124
  %v70 = vpop.permute.xlu0 %69
  %71 = vrot.lane.b32.xlu0 %v34, 124
  %v72 = vpop.permute.xlu0 %71
  %73 = vrot.lane.b32.xlu0 %v35, 124
  %v74 = vpop.permute.xlu0 %73
  %75 = vrot.lane.b32.xlu0 %v36, 124
  %v76 = vpop.permute.xlu0 %75
  %77 = vrot.lane.b32.xlu0 %v37, 124
  %v78 = vpop.permute.xlu0 %77
  %79 = vrot.lane.b32.xlu0 %v38, 124
  %v80 = vpop.permute.xlu0 %79
  %81 = vrot.lane.b32.xlu0 %v39, 124
  %v82 = vpop.permute.xlu0 %81
  %83 = vrot.lane.b32.xlu0 %v40, 124
  %v84 = vpop.permute.xlu0 %83
  %85 = vrot.lane.b32.xlu0 %v41, 124
  %v86 = vpop.permute.xlu0 %85
  %87 = vrot.lane.b32.xlu0 %v42, 124
  %v88 = vpop.permute.xlu0 %87
  %89 = vrot.lane.b32.xlu0 %v43, 124
  %v90 = vpop.permute.xlu0 %89
  %91 = vrot.lane.b32.xlu0 %v44, 124
  %v92 = vpop.permute.xlu0 %91
  %v109 = vadd.f32 %v29, %v62
  %v110 = vadd.f32 %v30, %v64
  %v111 = vadd.f32 %v31, %v66
  %v112 = vadd.f32 %v32, %v68
  %v113 = vadd.f32 %v33, %v70
  %v114 = vadd.f32 %v34, %v72
  %v115 = vadd.f32 %v35, %v74
  %v116 = vadd.f32 %v36, %v76
  %v117 = vadd.f32 %v37, %v78
  %v118 = vadd.f32 %v38, %v80
  %v119 = vadd.f32 %v39, %v82
  %v120 = vadd.f32 %v40, %v84
  %v121 = vadd.f32 %v41, %v86
  %v122 = vadd.f32 %v42, %v88
  %v123 = vadd.f32 %v43, %v90
  %v124 = vadd.f32 %v44, %v92
  %v125 = vrsqrt.pop %v109
  %v126 = vmul.f32 %v109, %v125
  %vm127 = vcmp.eq.f32.partialorder %v109, inf
  %v128 = vsel %vm127, %v109, %v126
  %vm129 = vcmp.eq.f32.partialorder %v109, 0.0
  %v130 = vand.u32 %v109, 2147483648
  %v131 = vsel %vm129, %v130, %v128
  %v132 = vrsqrt.pop %v110
  %v133 = vmul.f32 %v110, %v132
  %vm134 = vcmp.eq.f32.partialorder %v110, inf
  %v135 = vsel %vm134, %v110, %v133
  %vm136 = vcmp.eq.f32.partialorder %v110, 0.0
  %v137 = vand.u32 %v110, 2147483648
  %v138 = vsel %vm136, %v137, %v135
  %v139 = vrsqrt.pop %v111
  %v140 = vmul.f32 %v111, %v139
  %vm141 = vcmp.eq.f32.partialorder %v111, inf
  %v142 = vsel %vm141, %v111, %v140
  %vm143 = vcmp.eq.f32.partialorder %v111, 0.0
  %v144 = vand.u32 %v111, 2147483648
  %v145 = vsel %vm143, %v144, %v142
  %v146 = vrsqrt.pop %v112
  %v147 = vmul.f32 %v112, %v146
  %vm148 = vcmp.eq.f32.partialorder %v112, inf
  %v149 = vsel %vm148, %v112, %v147
  %vm150 = vcmp.eq.f32.partialorder %v112, 0.0
  %v151 = vand.u32 %v112, 2147483648
  %v152 = vsel %vm150, %v151, %v149
  %v153 = vrsqrt.pop %v113
  %v154 = vmul.f32 %v113, %v153
  %vm155 = vcmp.eq.f32.partialorder %v113, inf
  %v156 = vsel %vm155, %v113, %v154
  %vm157 = vcmp.eq.f32.partialorder %v113, 0.0
  %v158 = vand.u32 %v113, 2147483648
  %v159 = vsel %vm157, %v158, %v156
  %v160 = vrsqrt.pop %v114
  %v161 = vmul.f32 %v114, %v160
  %vm162 = vcmp.eq.f32.partialorder %v114, inf
  %v163 = vsel %vm162, %v114, %v161
  %vm164 = vcmp.eq.f32.partialorder %v114, 0.0
  %v165 = vand.u32 %v114, 2147483648
  %v166 = vsel %vm164, %v165, %v163
  %v167 = vrsqrt.pop %v115
  %v168 = vmul.f32 %v115, %v167
  %vm169 = vcmp.eq.f32.partialorder %v115, inf
  %v170 = vsel %vm169, %v115, %v168
  %vm171 = vcmp.eq.f32.partialorder %v115, 0.0
  %v172 = vand.u32 %v115, 2147483648
  %v173 = vsel %vm171, %v172, %v170
  %v174 = vrsqrt.pop %v116
  %v175 = vmul.f32 %v116, %v174
  %vm176 = vcmp.eq.f32.partialorder %v116, inf
  %v177 = vsel %vm176, %v116, %v175
  %vm178 = vcmp.eq.f32.partialorder %v116, 0.0
  %v179 = vand.u32 %v116, 2147483648
  %v180 = vsel %vm178, %v179, %v177
  %v181 = vrsqrt.pop %v117
  %v182 = vmul.f32 %v117, %v181
  %vm183 = vcmp.eq.f32.partialorder %v117, inf
  %v184 = vsel %vm183, %v117, %v182
  %vm185 = vcmp.eq.f32.partialorder %v117, 0.0
  %v186 = vand.u32 %v117, 2147483648
  %v187 = vsel %vm185, %v186, %v184
  %v188 = vrsqrt.pop %v118
  %v189 = vmul.f32 %v118, %v188
  %vm190 = vcmp.eq.f32.partialorder %v118, inf
  %v191 = vsel %vm190, %v118, %v189
  %vm192 = vcmp.eq.f32.partialorder %v118, 0.0
  %v193 = vand.u32 %v118, 2147483648
  %v194 = vsel %vm192, %v193, %v191
  %v195 = vrsqrt.pop %v119
  %v196 = vmul.f32 %v119, %v195
  %vm197 = vcmp.eq.f32.partialorder %v119, inf
  %v198 = vsel %vm197, %v119, %v196
  %vm199 = vcmp.eq.f32.partialorder %v119, 0.0
  %v200 = vand.u32 %v119, 2147483648
  %v201 = vsel %vm199, %v200, %v198
  %v202 = vrsqrt.pop %v120
  %v203 = vmul.f32 %v120, %v202
  %vm204 = vcmp.eq.f32.partialorder %v120, inf
  %v205 = vsel %vm204, %v120, %v203
  %vm206 = vcmp.eq.f32.partialorder %v120, 0.0
  %v207 = vand.u32 %v120, 2147483648
  %v208 = vsel %vm206, %v207, %v205
  %v209 = vrsqrt.pop %v121
  %v210 = vmul.f32 %v121, %v209
  %vm211 = vcmp.eq.f32.partialorder %v121, inf
  %v212 = vsel %vm211, %v121, %v210
  %vm213 = vcmp.eq.f32.partialorder %v121, 0.0
  %v214 = vand.u32 %v121, 2147483648
  %v215 = vsel %vm213, %v214, %v212
  %v216 = vrsqrt.pop %v122
  %v217 = vmul.f32 %v122, %v216
  %vm218 = vcmp.eq.f32.partialorder %v122, inf
  %v219 = vsel %vm218, %v122, %v217
  %vm220 = vcmp.eq.f32.partialorder %v122, 0.0
  %v221 = vand.u32 %v122, 2147483648
  %v222 = vsel %vm220, %v221, %v219
  %v223 = vrsqrt.pop %v123
  %v224 = vmul.f32 %v123, %v223
  %vm225 = vcmp.eq.f32.partialorder %v123, inf
  %v226 = vsel %vm225, %v123, %v224
  %vm227 = vcmp.eq.f32.partialorder %v123, 0.0
  %v228 = vand.u32 %v123, 2147483648
  %v229 = vsel %vm227, %v228, %v226
  %v230 = vrsqrt.pop %v124
  %v231 = vmul.f32 %v124, %v230
  %vm232 = vcmp.eq.f32.partialorder %v124, inf
  %v233 = vsel %vm232, %v124, %v231
  %vm234 = vcmp.eq.f32.partialorder %v124, 0.0
  %v235 = vand.u32 %v124, 2147483648
  %v236 = vsel %vm234, %v235, %v233
  %v237 = vlaneseq
  %v238 = vshrl.u32 %v237, 7
  %v239 = vsub.s32 0, %v238
  %v240 = vrot.slane %v27, %v239
  %v241 = vmul.f32 %v131, %v240
  %v242 = vmul.f32 %v138, %v240
  %v243 = vmul.f32 %v145, %v240
  %v244 = vmul.f32 %v152, %v240
  %v245 = vmul.f32 %v159, %v240
  %v246 = vmul.f32 %v166, %v240
  %v247 = vmul.f32 %v173, %v240
  %v248 = vmul.f32 %v180, %v240
  %v249 = vmul.f32 %v187, %v240
  %v250 = vmul.f32 %v194, %v240
  %v251 = vmul.f32 %v201, %v240
  %v252 = vmul.f32 %v208, %v240
  %v253 = vmul.f32 %v215, %v240
  %v254 = vmul.f32 %v222, %v240
  %v255 = vmul.f32 %v229, %v240
  %v256 = vmul.f32 %v236, %v240
  %v257 = vlaneseq
  %v258 = vshrl.u32 %v257, 7
  %v259 = vsub.s32 0, %v258
  %v260 = vrot.slane %v28, %v259
  %v261 = vadd.f32 %v241, %v260
  %v262 = vadd.f32 %v242, %v260
  %v263 = vadd.f32 %v243, %v260
  %v264 = vadd.f32 %v244, %v260
  %v265 = vadd.f32 %v245, %v260
  %v266 = vadd.f32 %v246, %v260
  %v267 = vadd.f32 %v247, %v260
  %v268 = vadd.f32 %v248, %v260
  %v269 = vadd.f32 %v249, %v260
  %v270 = vadd.f32 %v250, %v260
  %v271 = vadd.f32 %v251, %v260
  %v272 = vadd.f32 %v252, %v260
  %v273 = vadd.f32 %v253, %v260
  %v274 = vadd.f32 %v254, %v260
  %v275 = vadd.f32 %v255, %v260
  %v276 = vadd.f32 %v256, %v260
  %v277 = vadd.f32 %v131, 1e-06
  %v278 = vadd.f32 %v138, 1e-06
  %v279 = vadd.f32 %v145, 1e-06
  %v280 = vadd.f32 %v152, 1e-06
  %v281 = vadd.f32 %v159, 1e-06
  %v282 = vadd.f32 %v166, 1e-06
  %v283 = vadd.f32 %v173, 1e-06
  %v284 = vadd.f32 %v180, 1e-06
  %v285 = vadd.f32 %v187, 1e-06
  %v286 = vadd.f32 %v194, 1e-06
  %v287 = vadd.f32 %v201, 1e-06
  %v288 = vadd.f32 %v208, 1e-06
  %v289 = vadd.f32 %v215, 1e-06
  %v290 = vadd.f32 %v222, 1e-06
  %v291 = vadd.f32 %v229, 1e-06
  %v292 = vadd.f32 %v236, 1e-06
  %v293 = vrcp.pop %v277
  %v294 = vmul.f32 %v261, %v293
  %v295 = vrcp.pop %v278
  %v296 = vmul.f32 %v262, %v295
  %v297 = vrcp.pop %v279
  %v298 = vmul.f32 %v263, %v297
  %v299 = vrcp.pop %v280
  %v300 = vmul.f32 %v264, %v299
  %v301 = vrcp.pop %v281
  %v302 = vmul.f32 %v265, %v301
  %v303 = vrcp.pop %v282
  %v304 = vmul.f32 %v266, %v303
  %v305 = vrcp.pop %v283
  %v306 = vmul.f32 %v267, %v305
  %v307 = vrcp.pop %v284
  %v308 = vmul.f32 %v268, %v307
  %v309 = vrcp.pop %v285
  %v310 = vmul.f32 %v269, %v309
  %v311 = vrcp.pop %v286
  %v312 = vmul.f32 %v270, %v311
  %v313 = vrcp.pop %v287
  %v314 = vmul.f32 %v271, %v313
  %v315 = vrcp.pop %v288
  %v316 = vmul.f32 %v272, %v315
  %v317 = vrcp.pop %v289
  %v318 = vmul.f32 %v273, %v317
  %v319 = vrcp.pop %v290
  %v320 = vmul.f32 %v274, %v319
  %v321 = vrcp.pop %v291
  %v322 = vmul.f32 %v275, %v321
  %v323 = vrcp.pop %v292
  %v324 = vmul.f32 %v276, %v323
  %v325 = vmul.f32 %v11, %v294
  %v326 = vmul.f32 %v12, %v296
  %v327 = vmul.f32 %v13, %v298
  %v328 = vmul.f32 %v14, %v300
  %v329 = vmul.f32 %v15, %v302
  %v330 = vmul.f32 %v16, %v304
  %v331 = vmul.f32 %v17, %v306
  %v332 = vmul.f32 %v18, %v308
  %v333 = vmul.f32 %v19, %v310
  %v334 = vmul.f32 %v20, %v312
  %v335 = vmul.f32 %v21, %v314
  %v336 = vmul.f32 %v22, %v316
  %v337 = vmul.f32 %v23, %v318
  %v338 = vmul.f32 %v24, %v320
  %v339 = vmul.f32 %v25, %v322
  %v340 = vmul.f32 %v26, %v324
  %357 = vrot.lane.b32.xlu0 %v294, 4
  %v358 = vpop.permute.xlu0 %357
  %359 = vrot.lane.b32.xlu0 %v296, 4
  %v360 = vpop.permute.xlu0 %359
  %361 = vrot.lane.b32.xlu0 %v298, 4
  %v362 = vpop.permute.xlu0 %361
  %363 = vrot.lane.b32.xlu0 %v300, 4
  %v364 = vpop.permute.xlu0 %363
  %365 = vrot.lane.b32.xlu0 %v302, 4
  %v366 = vpop.permute.xlu0 %365
  %367 = vrot.lane.b32.xlu0 %v304, 4
  %v368 = vpop.permute.xlu0 %367
  %369 = vrot.lane.b32.xlu0 %v306, 4
  %v370 = vpop.permute.xlu0 %369
  %371 = vrot.lane.b32.xlu0 %v308, 4
  %v372 = vpop.permute.xlu0 %371
  %373 = vrot.lane.b32.xlu0 %v310, 4
  %v374 = vpop.permute.xlu0 %373
  %375 = vrot.lane.b32.xlu0 %v312, 4
  %v376 = vpop.permute.xlu0 %375
  %377 = vrot.lane.b32.xlu0 %v314, 4
  %v378 = vpop.permute.xlu0 %377
  %379 = vrot.lane.b32.xlu0 %v316, 4
  %v380 = vpop.permute.xlu0 %379
  %381 = vrot.lane.b32.xlu0 %v318, 4
  %v382 = vpop.permute.xlu0 %381
  %383 = vrot.lane.b32.xlu0 %v320, 4
  %v384 = vpop.permute.xlu0 %383
  %385 = vrot.lane.b32.xlu0 %v322, 4
  %v386 = vpop.permute.xlu0 %385
  %387 = vrot.lane.b32.xlu0 %v324, 4
  %v388 = vpop.permute.xlu0 %387
  %v405 = vmul.f32 %v11, %v358
  %v406 = vmul.f32 %v12, %v360
  %v407 = vmul.f32 %v13, %v362
  %v408 = vmul.f32 %v14, %v364
  %v409 = vmul.f32 %v15, %v366
  %v410 = vmul.f32 %v16, %v368
  %v411 = vmul.f32 %v17, %v370
  %v412 = vmul.f32 %v18, %v372
  %v413 = vmul.f32 %v19, %v374
  %v414 = vmul.f32 %v20, %v376
  %v415 = vmul.f32 %v21, %v378
  %v416 = vmul.f32 %v22, %v380
  %v417 = vmul.f32 %v23, %v382
  %v418 = vmul.f32 %v24, %v384
  %v419 = vmul.f32 %v25, %v386
  %v420 = vmul.f32 %v26, %v388
  %vm421 = vcmask 31744
  %v422 = vsel %vm421, %v325, %v405
  %v423 = vsel %vm421, %v326, %v406
  %v424 = vsel %vm421, %v327, %v407
  %v425 = vsel %vm421, %v328, %v408
  %v426 = vsel %vm421, %v329, %v409
  %v427 = vsel %vm421, %v330, %v410
  %v428 = vsel %vm421, %v331, %v411
  %v429 = vsel %vm421, %v332, %v412
  %v430 = vsel %vm421, %v333, %v413
  %v431 = vsel %vm421, %v334, %v414
  %v432 = vsel %vm421, %v335, %v415
  %v433 = vsel %vm421, %v336, %v416
  %v434 = vsel %vm421, %v337, %v417
  %v435 = vsel %vm421, %v338, %v418
  %v436 = vsel %vm421, %v339, %v419
  %v437 = vsel %vm421, %v340, %v420
  %v438 = vmax.f32 %v422, 0.0
  %v439 = vmax.f32 %v423, 0.0
  %v440 = vmax.f32 %v424, 0.0
  %v441 = vmax.f32 %v425, 0.0
  %v442 = vmax.f32 %v426, 0.0
  %v443 = vmax.f32 %v427, 0.0
  %v444 = vmax.f32 %v428, 0.0
  %v445 = vmax.f32 %v429, 0.0
  %v446 = vmax.f32 %v430, 0.0
  %v447 = vmax.f32 %v431, 0.0
  %v448 = vmax.f32 %v432, 0.0
  %v449 = vmax.f32 %v433, 0.0
  %v450 = vmax.f32 %v434, 0.0
  %v451 = vmax.f32 %v435, 0.0
  %v452 = vmax.f32 %v436, 0.0
  %v453 = vmax.f32 %v437, 0.0
  %vm454 = vcmask 64512
  %455 = vst.msk [vmem:[%s2] sm:$0xff] %vm454, %v438
  %456 = vst.msk [vmem:[%s2 + $0x8] sm:$0xff] %vm454, %v439
  %457 = vst.msk [vmem:[%s2 + $0x10] sm:$0xff] %vm454, %v440
  %458 = vst.msk [vmem:[%s2 + $0x18] sm:$0xff] %vm454, %v441
  %459 = vst.msk [vmem:[%s2 + $0x20] sm:$0xff] %vm454, %v442
  %460 = vst.msk [vmem:[%s2 + $0x28] sm:$0xff] %vm454, %v443
  %461 = vst.msk [vmem:[%s2 + $0x30] sm:$0xff] %vm454, %v444
  %462 = vst.msk [vmem:[%s2 + $0x38] sm:$0xff] %vm454, %v445
  %463 = vst.msk [vmem:[%s2 + $0x40] sm:$0xff] %vm454, %v446
  %464 = vst.msk [vmem:[%s2 + $0x48] sm:$0xff] %vm454, %v447
  %465 = vst.msk [vmem:[%s2 + $0x50] sm:$0xff] %vm454, %v448
  %466 = vst.msk [vmem:[%s2 + $0x58] sm:$0xff] %vm454, %v449
  %467 = vst.msk [vmem:[%s2 + $0x60] sm:$0xff] %vm454, %v450
  %468 = vst.msk [vmem:[%s2 + $0x68] sm:$0xff] %vm454, %v451
  %469 = vst.msk [vmem:[%s2 + $0x70] sm:$0xff] %vm454, %v452
  %470 = vst.msk [vmem:[%s2 + $0x78] sm:$0xff] %vm454, %v453
  // Predicated region
  $region10: #{down_forward.7} parent=0 // pred_check
    _
  $region11: #{down_forward.7} parent=0 // pred_check_branch
    %472 = sbr.rel (0) target = $region13
  $region12: #{down_forward.7} parent=0 // pred_region
    _
  $region13: #{down_forward.7} parent=0 // pred_fallthru
    _
  // Predicated region
  $region14: #{down_forward.7} parent=0 // pred_check
    _
  $region15: #{down_forward.7} parent=0 // pred_check_branch
    %474 = sbr.rel (0) target = $region17
  $region16: #{down_forward.7} parent=0 // pred_region
    _
  $region17: #{down_forward.7} parent=0 // pred_fallthru
    _

// kernel: down_forward.6
$region0: #{down_forward.6}
  #allocation0 [shape = 'u32[]', space=smem, size = 0x4, offset = 0x4, fixed_abs, tag = 'smem constant byte address 0x4 - core index']
  #allocation1 [shape = 'u32[144,128]{1,0:T(1,128)}', space=vmem, size = 0x12000, scoped, tag = 'internal scratch']
  %s0 = inlined_call_operand.vmem [shape: f32[128,72], index: 0, kind: input, shape index: {}]
  %s1 = inlined_call_operand.vmem [shape: f32[72,8], index: 1, kind: input, shape index: {}]
  %s2 = inlined_call_operand.vmem [shape: f32[1,8], index: 2, kind: input, shape index: {}]
  %s3 = inlined_call_operand.vmem [shape: f32[128,8], index: 3, kind: output, shape index: {0}]
  %s4 = inlined_call_operand.vmem [shape: f32[1,2,4], index: 4, kind: output, shape index: {1}]
  %5 = xla_tuple %s3, %s4
  %s6 = sld [smem:[#allocation0]]
  $region30: #{down_forward.6} parent=0
    _
  %s8 = ssub.s32 1, %s6
  %s9 = scalar_select 0, %s8, %s6
  // Predicated region
  $region2: #{down_forward.6} parent=0 // pred_check
    _
  $region3: #{down_forward.6} parent=0 // pred_check_branch
    %11 = sbr.rel (0) target = $region5
  $region4: #{down_forward.6} parent=0 // pred_region
    _
  $region5: #{down_forward.6} parent=0 // pred_fallthru
    _
  // Predicated region
  $region6: #{down_forward.6} parent=0 // pred_check
    _
  $region7: #{down_forward.6} parent=0 // pred_check_branch
    %13 = sbr.rel (0) target = $region9
  $region8: #{down_forward.6} parent=0 // pred_region
    _
  $region9: #{down_forward.6} parent=0 // pred_fallthru
    _
  // Predicated region
  $region10: #{down_forward.6} parent=0 // pred_check
    _
  $region11: #{down_forward.6} parent=0 // pred_check_branch
    %15 = sbr.rel (0) target = $region13
  $region12: #{down_forward.6} parent=0 // pred_region
    _
  $region13: #{down_forward.6} parent=0 // pred_fallthru
    _
  %v16 = vld [vmem:[%s0] sm:$0xff]
  %v17 = vld [vmem:[%s0 + $0x8] sm:$0xff]
  %v18 = vld [vmem:[%s0 + $0x10] sm:$0xff]
  %v19 = vld [vmem:[%s0 + $0x18] sm:$0xff]
  %v20 = vld [vmem:[%s0 + $0x20] sm:$0xff]
  %v21 = vld [vmem:[%s0 + $0x28] sm:$0xff]
  %v22 = vld [vmem:[%s0 + $0x30] sm:$0xff]
  %v23 = vld [vmem:[%s0 + $0x38] sm:$0xff]
  %v24 = vld [vmem:[%s0 + $0x40] sm:$0xff]
  %v25 = vld [vmem:[%s0 + $0x48] sm:$0xff]
  %v26 = vld [vmem:[%s0 + $0x50] sm:$0xff]
  %v27 = vld [vmem:[%s0 + $0x58] sm:$0xff]
  %v28 = vld [vmem:[%s0 + $0x60] sm:$0xff]
  %v29 = vld [vmem:[%s0 + $0x68] sm:$0xff]
  %v30 = vld [vmem:[%s0 + $0x70] sm:$0xff]
  %v31 = vld [vmem:[%s0 + $0x78] sm:$0xff]
  %v32 = vld [vmem:[%s1] sm:$0xff]
  %v33 = vld [vmem:[%s1 + $0x8] sm:$0xff]
  %v34 = vld [vmem:[%s1 + $0x10] sm:$0xff]
  %v35 = vld [vmem:[%s1 + $0x18] sm:$0xff]
  %v36 = vld [vmem:[%s1 + $0x20] sm:$0xff]
  %v37 = vld [vmem:[%s1 + $0x28] sm:$0xff]
  %v38 = vld [vmem:[%s1 + $0x30] sm:$0xff]
  %v39 = vld [vmem:[%s1 + $0x38] sm:$0xff]
  %v40 = vld [vmem:[%s1 + $0x40] sm:$0xff]
  %v41 = vld [vmem:[%s2] sm:$0x1]
  %v43 = vlaneseq
  %v44 = vshrl.u32 %v43, 7
  %v45 = vsub.s32 0, %v44
  %v46 = vrot.slane %v41, %v45
  %vm48 = vcmask 588800
  %v50 = vsel %vm48, %v16, 0
  %v53 = vsel %vm48, %v17, 0
  %v56 = vsel %vm48, %v18, 0
  %v59 = vsel %vm48, %v19, 0
  %v62 = vsel %vm48, %v20, 0
  %v65 = vsel %vm48, %v21, 0
  %v68 = vsel %vm48, %v22, 0
  %v71 = vsel %vm48, %v23, 0
  %v74 = vsel %vm48, %v24, 0
  %v77 = vsel %vm48, %v25, 0
  %v80 = vsel %vm48, %v26, 0
  %v83 = vsel %vm48, %v27, 0
  %v86 = vsel %vm48, %v28, 0
  %v89 = vsel %vm48, %v29, 0
  %v92 = vsel %vm48, %v30, 0
  %v95 = vsel %vm48, %v31, 0
  %97 = vmatprep.subr.mxu0 0.0
  %98 = vmatpush1.msra.mxu0 %v32
  %99 = vmatprep.subr.mxu0 0.0
  %100 = vmatpush1.msra.mxu0 %v33
  %101 = vmatprep.subr.mxu0 0.0
  %102 = vmatpush1.msra.mxu0 %v34
  %103 = vmatprep.subr.mxu0 0.0
  %104 = vmatpush1.msra.mxu0 %v35
  %105 = vmatprep.subr.mxu0 0.0
  %106 = vmatpush1.msra.mxu0 %v36
  %107 = vmatprep.subr.mxu0 0.0
  %108 = vmatpush1.msra.mxu0 %v37
  %109 = vmatprep.subr.mxu0 0.0
  %110 = vmatpush1.msra.mxu0 %v38
  %111 = vmatprep.subr.mxu0 0.0
  %112 = vmatpush1.msra.mxu0 %v39
  %113 = vmatprep.subr.mxu0 0.0
  %114 = vmatpush1.msra.mxu0 %v40
  %115 = vmatprep.subr.mxu0 0.0
  %116 = vmatpush1.msra.mxu0 0.0
  %117 = vmatprep.subr.mxu0 0.0
  %118 = vmatpush1.msra.mxu0 0.0
  %119 = vmatprep.subr.mxu0 0.0
  %120 = vmatpush1.msra.mxu0 0.0
  %121 = vmatprep.subr.mxu0 0.0
  %122 = vmatpush1.msra.mxu0 0.0
  %123 = vmatprep.subr.mxu0 0.0
  %124 = vmatpush1.msra.mxu0 0.0
  %125 = vmatprep.subr.mxu0 0.0
  %126 = vmatpush1.msra.mxu0 0.0
  %127 = vmatprep.subr.mxu0 0.0
  %128 = vmatpush1.msra.mxu0 0.0
  %129 = vmatprep.subr.mxu0 0.0
  %130 = vmatpush1.msra.mxu0 0.0
  %131 = vmatprep.subr.mxu0 0.0
  %132 = vmatpush1.msra.mxu0 0.0
  %133 = vmatprep.subr.mxu0 0.0
  %134 = vmatpush1.msra.mxu0 0.0
  %135 = vmatprep.subr.mxu0 0.0
  %136 = vmatpush1.msra.mxu0 0.0
  %137 = vmatprep.subr.mxu0 0.0
  %138 = vmatpush1.msra.mxu0 0.0
  %139 = vmatprep.subr.mxu0 0.0
  %140 = vmatpush1.msra.mxu0 0.0
  %141 = vmatprep.subr.mxu0 0.0
  %142 = vmatpush1.msra.mxu0 0.0
  %143 = vmatprep.subr.mxu0 0.0
  %144 = vmatpush1.msra.mxu0 0.0
  %145 = vmatprep.subr.mxu0 0.0
  %146 = vmatpush1.msra.mxu0 0.0
  %147 = vmatprep.subr.mxu0 0.0
  %148 = vmatpush1.msra.mxu0 0.0
  %149 = vmatprep.subr.mxu0 0.0
  %150 = vmatpush1.msra.mxu0 0.0
  %151 = vmatprep.subr.mxu0 0.0
  %152 = vmatpush1.msra.mxu0 0.0
  %153 = vmatprep.subr.mxu0 0.0
  %154 = vmatpush1.msra.mxu0 0.0
  %155 = vmatprep.subr.mxu0 0.0
  %156 = vmatpush1.msra.mxu0 0.0
  %157 = vmatprep.subr.mxu0 0.0
  %158 = vmatpush1.msra.mxu0 0.0
  %159 = vmatprep.subr.mxu0 0.0
  %160 = vmatpush1.msra.mxu0 0.0
  %161 = vmatprep.mubr.f32.mxu0 0.0
  %162 = vmatmul.mubr.f32.gmra.mrb[0].mxu0 %v50
  %v163 = vpop.f32.mrb[0].mxu0
  %v164 = vadd.f32 %v46, %v163
  %v165 = vpop.f32.mrb[0].mxu0
  %166 = vmatprep.mubr.f32.mxu0 0.0
  %167 = vmatmul.mubr.f32.gmra.mrb[0].mxu0 %v53
  %v168 = vpop.f32.mrb[0].mxu0
  %v169 = vadd.f32 %v46, %v168
  %v170 = vpop.f32.mrb[0].mxu0
  %171 = vmatprep.mubr.f32.mxu0 0.0
  %172 = vmatmul.mubr.f32.gmra.mrb[0].mxu0 %v56
  %v173 = vpop.f32.mrb[0].mxu0
  %v174 = vadd.f32 %v46, %v173
  %v175 = vpop.f32.mrb[0].mxu0
  %176 = vmatprep.mubr.f32.mxu0 0.0
  %177 = vmatmul.mubr.f32.gmra.mrb[0].mxu0 %v59
  %v178 = vpop.f32.mrb[0].mxu0
  %v179 = vadd.f32 %v46, %v178
  %v180 = vpop.f32.mrb[0].mxu0
  %181 = vmatprep.mubr.f32.mxu0 0.0
  %182 = vmatmul.mubr.f32.gmra.mrb[0].mxu0 %v62
  %v183 = vpop.f32.mrb[0].mxu0
  %v184 = vadd.f32 %v46, %v183
  %v185 = vpop.f32.mrb[0].mxu0
  %186 = vmatprep.mubr.f32.mxu0 0.0
  %187 = vmatmul.mubr.f32.gmra.mrb[0].mxu0 %v65
  %v188 = vpop.f32.mrb[0].mxu0
  %v189 = vadd.f32 %v46, %v188
  %v190 = vpop.f32.mrb[0].mxu0
  %191 = vmatprep.mubr.f32.mxu0 0.0
  %192 = vmatmul.mubr.f32.gmra.mrb[0].mxu0 %v68
  %v193 = vpop.f32.mrb[0].mxu0
  %v194 = vadd.f32 %v46, %v193
  %v195 = vpop.f32.mrb[0].mxu0
  %196 = vmatprep.mubr.f32.mxu0 0.0
  %197 = vmatmul.mubr.f32.gmra.mrb[0].mxu0 %v71
  %v198 = vpop.f32.mrb[0].mxu0
  %v199 = vadd.f32 %v46, %v198
  %v200 = vpop.f32.mrb[0].mxu0
  %201 = vmatprep.mubr.f32.mxu0 0.0
  %202 = vmatmul.mubr.f32.gmra.mrb[0].mxu0 %v74
  %v203 = vpop.f32.mrb[0].mxu0
  %v204 = vadd.f32 %v46, %v203
  %v205 = vpop.f32.mrb[0].mxu0
  %206 = vmatprep.mubr.f32.mxu0 0.0
  %207 = vmatmul.mubr.f32.gmra.mrb[0].mxu0 %v77
  %v208 = vpop.f32.mrb[0].mxu0
  %v209 = vadd.f32 %v46, %v208
  %v210 = vpop.f32.mrb[0].mxu0
  %211 = vmatprep.mubr.f32.mxu0 0.0
  %212 = vmatmul.mubr.f32.gmra.mrb[0].mxu0 %v80
  %v213 = vpop.f32.mrb[0].mxu0
  %v214 = vadd.f32 %v46, %v213
  %v215 = vpop.f32.mrb[0].mxu0
  %216 = vmatprep.mubr.f32.mxu0 0.0
  %217 = vmatmul.mubr.f32.gmra.mrb[0].mxu0 %v83
  %v218 = vpop.f32.mrb[0].mxu0
  %v219 = vadd.f32 %v46, %v218
  %v220 = vpop.f32.mrb[0].mxu0
  %221 = vmatprep.mubr.f32.mxu0 0.0
  %222 = vmatmul.mubr.f32.gmra.mrb[0].mxu0 %v86
  %v223 = vpop.f32.mrb[0].mxu0
  %v224 = vadd.f32 %v46, %v223
  %v225 = vpop.f32.mrb[0].mxu0
  %226 = vmatprep.mubr.f32.mxu0 0.0
  %227 = vmatmul.mubr.f32.gmra.mrb[0].mxu0 %v89
  %v228 = vpop.f32.mrb[0].mxu0
  %v229 = vadd.f32 %v46, %v228
  %v230 = vpop.f32.mrb[0].mxu0
  %231 = vmatprep.mubr.f32.mxu0 0.0
  %232 = vmatmul.mubr.f32.gmra.mrb[0].mxu0 %v92
  %v233 = vpop.f32.mrb[0].mxu0
  %v234 = vadd.f32 %v46, %v233
  %v235 = vpop.f32.mrb[0].mxu0
  %236 = vmatprep.mubr.f32.mxu0 0.0
  %237 = vmatmul.mubr.f32.gmra.mrb[0].mxu0 %v95
  %v238 = vpop.f32.mrb[0].mxu0
  %v239 = vadd.f32 %v46, %v238
  %v240 = vpop.f32.mrb[0].mxu0
  %241 = vdwg.mxu0
  %vm242 = vcmask 64512
  %243 = vst.msk [vmem:[%s3] sm:$0xff] %vm242, %v164
  %244 = vst.msk [vmem:[%s3 + $0x8] sm:$0xff] %vm242, %v169
  %245 = vst.msk [vmem:[%s3 + $0x10] sm:$0xff] %vm242, %v174
  %246 = vst.msk [vmem:[%s3 + $0x18] sm:$0xff] %vm242, %v179
  %247 = vst.msk [vmem:[%s3 + $0x20] sm:$0xff] %vm242, %v184
  %248 = vst.msk [vmem:[%s3 + $0x28] sm:$0xff] %vm242, %v189
  %249 = vst.msk [vmem:[%s3 + $0x30] sm:$0xff] %vm242, %v194
  %250 = vst.msk [vmem:[%s3 + $0x38] sm:$0xff] %vm242, %v199
  %251 = vst.msk [vmem:[%s3 + $0x40] sm:$0xff] %vm242, %v204
  %252 = vst.msk [vmem:[%s3 + $0x48] sm:$0xff] %vm242, %v209
  %253 = vst.msk [vmem:[%s3 + $0x50] sm:$0xff] %vm242, %v214
  %254 = vst.msk [vmem:[%s3 + $0x58] sm:$0xff] %vm242, %v219
  %255 = vst.msk [vmem:[%s3 + $0x60] sm:$0xff] %vm242, %v224
  %256 = vst.msk [vmem:[%s3 + $0x68] sm:$0xff] %vm242, %v229
  %257 = vst.msk [vmem:[%s3 + $0x70] sm:$0xff] %vm242, %v234
  %258 = vst.msk [vmem:[%s3 + $0x78] sm:$0xff] %vm242, %v239
  %v259 = vmul.f32 %v164, %v164
  %v260 = vmul.f32 %v169, %v169
  %v261 = vmul.f32 %v174, %v174
  %v262 = vmul.f32 %v179, %v179
  %v263 = vmul.f32 %v184, %v184
  %v264 = vmul.f32 %v189, %v189
  %v265 = vmul.f32 %v194, %v194
  %v266 = vmul.f32 %v199, %v199
  %v267 = vmul.f32 %v204, %v204
  %v268 = vmul.f32 %v209, %v209
  %v269 = vmul.f32 %v214, %v214
  %v270 = vmul.f32 %v219, %v219
  %v271 = vmul.f32 %v224, %v224
  %v272 = vmul.f32 %v229, %v229
  %v273 = vmul.f32 %v234, %v234
  %v274 = vmul.f32 %v239, %v239
  %291 = vrot.lane.b32.xlu0 %v259, 124
  %v292 = vpop.permute.xlu0 %291
  %293 = vrot.lane.b32.xlu0 %v260, 124
  %v294 = vpop.permute.xlu0 %293
  %295 = vrot.lane.b32.xlu0 %v261, 124
  %v296 = vpop.permute.xlu0 %295
  %297 = vrot.lane.b32.xlu0 %v262, 124
  %v298 = vpop.permute.xlu0 %297
  %299 = vrot.lane.b32.xlu0 %v263, 124
  %v300 = vpop.permute.xlu0 %299
  %301 = vrot.lane.b32.xlu0 %v264, 124
  %v302 = vpop.permute.xlu0 %301
  %303 = vrot.lane.b32.xlu0 %v265, 124
  %v304 = vpop.permute.xlu0 %303
  %305 = vrot.lane.b32.xlu0 %v266, 124
  %v306 = vpop.permute.xlu0 %305
  %307 = vrot.lane.b32.xlu0 %v267, 124
  %v308 = vpop.permute.xlu0 %307
  %309 = vrot.lane.b32.xlu0 %v268, 124
  %v310 = vpop.permute.xlu0 %309
  %311 = vrot.lane.b32.xlu0 %v269, 124
  %v312 = vpop.permute.xlu0 %311
  %313 = vrot.lane.b32.xlu0 %v270, 124
  %v314 = vpop.permute.xlu0 %313
  %315 = vrot.lane.b32.xlu0 %v271, 124
  %v316 = vpop.permute.xlu0 %315
  %317 = vrot.lane.b32.xlu0 %v272, 124
  %v318 = vpop.permute.xlu0 %317
  %319 = vrot.lane.b32.xlu0 %v273, 124
  %v320 = vpop.permute.xlu0 %319
  %321 = vrot.lane.b32.xlu0 %v274, 124
  %v322 = vpop.permute.xlu0 %321
  %v339 = vadd.f32 %v259, %v292
  %v340 = vadd.f32 %v260, %v294
  %v341 = vadd.f32 %v261, %v296
  %v342 = vadd.f32 %v262, %v298
  %v343 = vadd.f32 %v263, %v300
  %v344 = vadd.f32 %v264, %v302
  %v345 = vadd.f32 %v265, %v304
  %v346 = vadd.f32 %v266, %v306
  %v347 = vadd.f32 %v267, %v308
  %v348 = vadd.f32 %v268, %v310
  %v349 = vadd.f32 %v269, %v312
  %v350 = vadd.f32 %v270, %v314
  %v351 = vadd.f32 %v271, %v316
  %v352 = vadd.f32 %v272, %v318
  %v353 = vadd.f32 %v273, %v320
  %v354 = vadd.f32 %v274, %v322
  %v355 = vrsqrt.pop %v339
  %v356 = vmul.f32 %v339, %v355
  %vm357 = vcmp.eq.f32.partialorder %v339, inf
  %v358 = vsel %vm357, %v339, %v356
  %vm359 = vcmp.eq.f32.partialorder %v339, 0.0
  %v360 = vand.u32 %v339, 2147483648
  %v361 = vsel %vm359, %v360, %v358
  %v362 = vrsqrt.pop %v340
  %v363 = vmul.f32 %v340, %v362
  %vm364 = vcmp.eq.f32.partialorder %v340, inf
  %v365 = vsel %vm364, %v340, %v363
  %vm366 = vcmp.eq.f32.partialorder %v340, 0.0
  %v367 = vand.u32 %v340, 2147483648
  %v368 = vsel %vm366, %v367, %v365
  %v369 = vrsqrt.pop %v341
  %v370 = vmul.f32 %v341, %v369
  %vm371 = vcmp.eq.f32.partialorder %v341, inf
  %v372 = vsel %vm371, %v341, %v370
  %vm373 = vcmp.eq.f32.partialorder %v341, 0.0
  %v374 = vand.u32 %v341, 2147483648
  %v375 = vsel %vm373, %v374, %v372
  %v376 = vrsqrt.pop %v342
  %v377 = vmul.f32 %v342, %v376
  %vm378 = vcmp.eq.f32.partialorder %v342, inf
  %v379 = vsel %vm378, %v342, %v377
  %vm380 = vcmp.eq.f32.partialorder %v342, 0.0
  %v381 = vand.u32 %v342, 2147483648
  %v382 = vsel %vm380, %v381, %v379
  %v383 = vrsqrt.pop %v343
  %v384 = vmul.f32 %v343, %v383
  %vm385 = vcmp.eq.f32.partialorder %v343, inf
  %v386 = vsel %vm385, %v343, %v384
  %vm387 = vcmp.eq.f32.partialorder %v343, 0.0
  %v388 = vand.u32 %v343, 2147483648
  %v389 = vsel %vm387, %v388, %v386
  %v390 = vrsqrt.pop %v344
  %v391 = vmul.f32 %v344, %v390
  %vm392 = vcmp.eq.f32.partialorder %v344, inf
  %v393 = vsel %vm392, %v344, %v391
  %vm394 = vcmp.eq.f32.partialorder %v344, 0.0
  %v395 = vand.u32 %v344, 2147483648
  %v396 = vsel %vm394, %v395, %v393
  %v397 = vrsqrt.pop %v345
  %v398 = vmul.f32 %v345, %v397
  %vm399 = vcmp.eq.f32.partialorder %v345, inf
  %v400 = vsel %vm399, %v345, %v398
  %vm401 = vcmp.eq.f32.partialorder %v345, 0.0
  %v402 = vand.u32 %v345, 2147483648
  %v403 = vsel %vm401, %v402, %v400
  %v404 = vrsqrt.pop %v346
  %v405 = vmul.f32 %v346, %v404
  %vm406 = vcmp.eq.f32.partialorder %v346, inf
  %v407 = vsel %vm406, %v346, %v405
  %vm408 = vcmp.eq.f32.partialorder %v346, 0.0
  %v409 = vand.u32 %v346, 2147483648
  %v410 = vsel %vm408, %v409, %v407
  %v411 = vrsqrt.pop %v347
  %v412 = vmul.f32 %v347, %v411
  %vm413 = vcmp.eq.f32.partialorder %v347, inf
  %v414 = vsel %vm413, %v347, %v412
  %vm415 = vcmp.eq.f32.partialorder %v347, 0.0
  %v416 = vand.u32 %v347, 2147483648
  %v417 = vsel %vm415, %v416, %v414
  %v418 = vrsqrt.pop %v348
  %v419 = vmul.f32 %v348, %v418
  %vm420 = vcmp.eq.f32.partialorder %v348, inf
  %v421 = vsel %vm420, %v348, %v419
  %vm422 = vcmp.eq.f32.partialorder %v348, 0.0
  %v423 = vand.u32 %v348, 2147483648
  %v424 = vsel %vm422, %v423, %v421
  %v425 = vrsqrt.pop %v349
  %v426 = vmul.f32 %v349, %v425
  %vm427 = vcmp.eq.f32.partialorder %v349, inf
  %v428 = vsel %vm427, %v349, %v426
  %vm429 = vcmp.eq.f32.partialorder %v349, 0.0
  %v430 = vand.u32 %v349, 2147483648
  %v431 = vsel %vm429, %v430, %v428
  %v432 = vrsqrt.pop %v350
  %v433 = vmul.f32 %v350, %v432
  %vm434 = vcmp.eq.f32.partialorder %v350, inf
  %v435 = vsel %vm434, %v350, %v433
  %vm436 = vcmp.eq.f32.partialorder %v350, 0.0
  %v437 = vand.u32 %v350, 2147483648
  %v438 = vsel %vm436, %v437, %v435
  %v439 = vrsqrt.pop %v351
  %v440 = vmul.f32 %v351, %v439
  %vm441 = vcmp.eq.f32.partialorder %v351, inf
  %v442 = vsel %vm441, %v351, %v440
  %vm443 = vcmp.eq.f32.partialorder %v351, 0.0
  %v444 = vand.u32 %v351, 2147483648
  %v445 = vsel %vm443, %v444, %v442
  %v446 = vrsqrt.pop %v352
  %v447 = vmul.f32 %v352, %v446
  %vm448 = vcmp.eq.f32.partialorder %v352, inf
  %v449 = vsel %vm448, %v352, %v447
  %vm450 = vcmp.eq.f32.partialorder %v352, 0.0
  %v451 = vand.u32 %v352, 2147483648
  %v452 = vsel %vm450, %v451, %v449
  %v453 = vrsqrt.pop %v353
  %v454 = vmul.f32 %v353, %v453
  %vm455 = vcmp.eq.f32.partialorder %v353, inf
  %v456 = vsel %vm455, %v353, %v454
  %vm457 = vcmp.eq.f32.partialorder %v353, 0.0
  %v458 = vand.u32 %v353, 2147483648
  %v459 = vsel %vm457, %v458, %v456
  %v460 = vrsqrt.pop %v354
  %v461 = vmul.f32 %v354, %v460
  %vm462 = vcmp.eq.f32.partialorder %v354, inf
  %v463 = vsel %vm462, %v354, %v461
  %vm464 = vcmp.eq.f32.partialorder %v354, 0.0
  %v465 = vand.u32 %v354, 2147483648
  %v466 = vsel %vm464, %v465, %v463
  %vm467 = vcmask 31744
  %v468 = vsel %vm467, %v361, 0.0
  %v469 = vsel %vm467, %v368, 0.0
  %v470 = vadd.f32 %v468, %v469
  %v471 = vsel %vm467, %v375, 0.0
  %v472 = vadd.f32 %v470, %v471
  %v473 = vsel %vm467, %v382, 0.0
  %v474 = vadd.f32 %v472, %v473
  %v475 = vsel %vm467, %v389, 0.0
  %v476 = vadd.f32 %v474, %v475
  %v477 = vsel %vm467, %v396, 0.0
  %v478 = vadd.f32 %v476, %v477
  %v479 = vsel %vm467, %v403, 0.0
  %v480 = vadd.f32 %v478, %v479
  %v481 = vsel %vm467, %v410, 0.0
  %v482 = vadd.f32 %v480, %v481
  %v483 = vsel %vm467, %v417, 0.0
  %v484 = vadd.f32 %v482, %v483
  %v485 = vsel %vm467, %v424, 0.0
  %v486 = vadd.f32 %v484, %v485
  %v487 = vsel %vm467, %v431, 0.0
  %v488 = vadd.f32 %v486, %v487
  %v489 = vsel %vm467, %v438, 0.0
  %v490 = vadd.f32 %v488, %v489
  %v491 = vsel %vm467, %v445, 0.0
  %v492 = vadd.f32 %v490, %v491
  %v493 = vsel %vm467, %v452, 0.0
  %v494 = vadd.f32 %v492, %v493
  %v495 = vsel %vm467, %v459, 0.0
  %v496 = vadd.f32 %v494, %v495
  %v497 = vsel %vm467, %v466, 0.0
  %v498 = vadd.f32 %v496, %v497
  %v499 = vrot.slane %v498, 4
  %v500 = vadd.f32 %v498, %v499
  %v501 = vrot.slane %v500, 2
  %v502 = vadd.f32 %v500, %v501
  %v503 = vrot.slane %v502, 1
  %v504 = vadd.f32 %v502, %v503
  %v505 = vsel %vm467, %v339, 0.0
  %v506 = vsel %vm467, %v340, 0.0
  %v507 = vadd.f32 %v505, %v506
  %v508 = vsel %vm467, %v341, 0.0
  %v509 = vadd.f32 %v507, %v508
  %v510 = vsel %vm467, %v342, 0.0
  %v511 = vadd.f32 %v509, %v510
  %v512 = vsel %vm467, %v343, 0.0
  %v513 = vadd.f32 %v511, %v512
  %v514 = vsel %vm467, %v344, 0.0
  %v515 = vadd.f32 %v513, %v514
  %v516 = vsel %vm467, %v345, 0.0
  %v517 = vadd.f32 %v515, %v516
  %v518 = vsel %vm467, %v346, 0.0
  %v519 = vadd.f32 %v517, %v518
  %v520 = vsel %vm467, %v347, 0.0
  %v521 = vadd.f32 %v519, %v520
  %v522 = vsel %vm467, %v348, 0.0
  %v523 = vadd.f32 %v521, %v522
  %v524 = vsel %vm467, %v349, 0.0
  %v525 = vadd.f32 %v523, %v524
  %v526 = vsel %vm467, %v350, 0.0
  %v527 = vadd.f32 %v525, %v526
  %v528 = vsel %vm467, %v351, 0.0
  %v529 = vadd.f32 %v527, %v528
  %v530 = vsel %vm467, %v352, 0.0
  %v531 = vadd.f32 %v529, %v530
  %v532 = vsel %vm467, %v353, 0.0
  %v533 = vadd.f32 %v531, %v532
  %v534 = vsel %vm467, %v354, 0.0
  %v535 = vadd.f32 %v533, %v534
  %v536 = vrot.slane %v535, 4
  %v537 = vadd.f32 %v535, %v536
  %v538 = vrot.slane %v537, 2
  %v539 = vadd.f32 %v537, %v538
  %v540 = vrot.slane %v539, 1
  %v541 = vadd.f32 %v539, %v540
  %vm542 = vcmask 1040384
  %v543 = vsel %vm542, %v504, %v541
  %vm544 = vcmask 25600
  %545 = vst.msk [vmem:[%s4] sm:$0x3] %vm544, %v543
  // Predicated region
  $region14: #{down_forward.6} parent=0 // pred_check
    _
  $region15: #{down_forward.6} parent=0 // pred_check_branch
    %547 = sbr.rel (0) target = $region17
  $region16: #{down_forward.6} parent=0 // pred_region
    _
  $region17: #{down_forward.6} parent=0 // pred_fallthru
    _
  // Predicated region
  $region18: #{down_forward.6} parent=0 // pred_check
    _
  $region19: #{down_forward.6} parent=0 // pred_check_branch
    %549 = sbr.rel (0) target = $region21
  $region20: #{down_forward.6} parent=0 // pred_region
    _
  $region21: #{down_forward.6} parent=0 // pred_fallthru
    _
  // Predicated region
  $region22: #{down_forward.6} parent=0 // pred_check
    _
  $region23: #{down_forward.6} parent=0 // pred_check_branch
    %551 = sbr.rel (0) target = $region25
  $region24: #{down_forward.6} parent=0 // pred_region
    _
  $region25: #{down_forward.6} parent=0 // pred_fallthru
    _
  // Predicated region
  $region26: #{down_forward.6} parent=0 // pred_check
    _
  $region27: #{down_forward.6} parent=0 // pred_check_branch
    %553 = sbr.rel (0) target = $region29
  $region28: #{down_forward.6} parent=0 // pred_region
    _
  $region29: #{down_forward.6} parent=0 // pred_fallthru
    _

// kernel: down_forward.9
$region0: #{down_forward.9}
  #allocation0 [shape = 'u32[]', space=smem, size = 0x4, offset = 0x4, fixed_abs, tag = 'smem constant byte address 0x4 - core index']
  #allocation1 [shape = 'u32[144,128]{1,0:T(1,128)}', space=vmem, size = 0x12000, scoped, tag = 'internal scratch']
  %s0 = inlined_call_operand.vmem [shape: f32[128,16], index: 0, kind: input, shape index: {}]
  %s1 = inlined_call_operand.vmem [shape: f32[2,8], index: 1, kind: input, shape index: {}]
  %s2 = inlined_call_operand.vmem [shape: f32[128,16], index: 2, kind: output, shape index: {}]
  %s3 = sld [smem:[#allocation0]]
  $region18: #{down_forward.9} parent=0
    _
  %s5 = ssub.s32 1, %s3
  %s6 = scalar_select 0, %s5, %s3
  // Predicated region
  $region2: #{down_forward.9} parent=0 // pred_check
    _
  $region3: #{down_forward.9} parent=0 // pred_check_branch
    %8 = sbr.rel (0) target = $region5
  $region4: #{down_forward.9} parent=0 // pred_region
    _
  $region5: #{down_forward.9} parent=0 // pred_fallthru
    _
  // Predicated region
  $region6: #{down_forward.9} parent=0 // pred_check
    _
  $region7: #{down_forward.9} parent=0 // pred_check_branch
    %10 = sbr.rel (0) target = $region9
  $region8: #{down_forward.9} parent=0 // pred_region
    _
  $region9: #{down_forward.9} parent=0 // pred_fallthru
    _
  %v11 = vld [vmem:[%s0] sm:$0xff]
  %v12 = vld [vmem:[%s0 + $0x8] sm:$0xff]
  %v13 = vld [vmem:[%s0 + $0x10] sm:$0xff]
  %v14 = vld [vmem:[%s0 + $0x18] sm:$0xff]
  %v15 = vld [vmem:[%s0 + $0x20] sm:$0xff]
  %v16 = vld [vmem:[%s0 + $0x28] sm:$0xff]
  %v17 = vld [vmem:[%s0 + $0x30] sm:$0xff]
  %v18 = vld [vmem:[%s0 + $0x38] sm:$0xff]
  %v19 = vld [vmem:[%s0 + $0x40] sm:$0xff]
  %v20 = vld [vmem:[%s0 + $0x48] sm:$0xff]
  %v21 = vld [vmem:[%s0 + $0x50] sm:$0xff]
  %v22 = vld [vmem:[%s0 + $0x58] sm:$0xff]
  %v23 = vld [vmem:[%s0 + $0x60] sm:$0xff]
  %v24 = vld [vmem:[%s0 + $0x68] sm:$0xff]
  %v25 = vld [vmem:[%s0 + $0x70] sm:$0xff]
  %v26 = vld [vmem:[%s0 + $0x78] sm:$0xff]
  %v27 = vld [vmem:[%s1] sm:$0x1]
  %v28 = vld [vmem:[%s1 + $0x1] sm:$0x1]
  %v29 = vmul.f32 %v11, %v11
  %v30 = vmul.f32 %v12, %v12
  %v31 = vmul.f32 %v13, %v13
  %v32 = vmul.f32 %v14, %v14
  %v33 = vmul.f32 %v15, %v15
  %v34 = vmul.f32 %v16, %v16
  %v35 = vmul.f32 %v17, %v17
  %v36 = vmul.f32 %v18, %v18
  %v37 = vmul.f32 %v19, %v19
  %v38 = vmul.f32 %v20, %v20
  %v39 = vmul.f32 %v21, %v21
  %v40 = vmul.f32 %v22, %v22
  %v41 = vmul.f32 %v23, %v23
  %v42 = vmul.f32 %v24, %v24
  %v43 = vmul.f32 %v25, %v25
  %v44 = vmul.f32 %v26, %v26
  %61 = vrot.lane.b32.xlu0 %v29, 120
  %v62 = vpop.permute.xlu0 %61
  %63 = vrot.lane.b32.xlu0 %v30, 120
  %v64 = vpop.permute.xlu0 %63
  %65 = vrot.lane.b32.xlu0 %v31, 120
  %v66 = vpop.permute.xlu0 %65
  %67 = vrot.lane.b32.xlu0 %v32, 120
  %v68 = vpop.permute.xlu0 %67
  %69 = vrot.lane.b32.xlu0 %v33, 120
  %v70 = vpop.permute.xlu0 %69
  %71 = vrot.lane.b32.xlu0 %v34, 120
  %v72 = vpop.permute.xlu0 %71
  %73 = vrot.lane.b32.xlu0 %v35, 120
  %v74 = vpop.permute.xlu0 %73
  %75 = vrot.lane.b32.xlu0 %v36, 120
  %v76 = vpop.permute.xlu0 %75
  %77 = vrot.lane.b32.xlu0 %v37, 120
  %v78 = vpop.permute.xlu0 %77
  %79 = vrot.lane.b32.xlu0 %v38, 120
  %v80 = vpop.permute.xlu0 %79
  %81 = vrot.lane.b32.xlu0 %v39, 120
  %v82 = vpop.permute.xlu0 %81
  %83 = vrot.lane.b32.xlu0 %v40, 120
  %v84 = vpop.permute.xlu0 %83
  %85 = vrot.lane.b32.xlu0 %v41, 120
  %v86 = vpop.permute.xlu0 %85
  %87 = vrot.lane.b32.xlu0 %v42, 120
  %v88 = vpop.permute.xlu0 %87
  %89 = vrot.lane.b32.xlu0 %v43, 120
  %v90 = vpop.permute.xlu0 %89
  %91 = vrot.lane.b32.xlu0 %v44, 120
  %v92 = vpop.permute.xlu0 %91
  %v109 = vadd.f32 %v29, %v62
  %v110 = vadd.f32 %v30, %v64
  %v111 = vadd.f32 %v31, %v66
  %v112 = vadd.f32 %v32, %v68
  %v113 = vadd.f32 %v33, %v70
  %v114 = vadd.f32 %v34, %v72
  %v115 = vadd.f32 %v35, %v74
  %v116 = vadd.f32 %v36, %v76
  %v117 = vadd.f32 %v37, %v78
  %v118 = vadd.f32 %v38, %v80
  %v119 = vadd.f32 %v39, %v82
  %v120 = vadd.f32 %v40, %v84
  %v121 = vadd.f32 %v41, %v86
  %v122 = vadd.f32 %v42, %v88
  %v123 = vadd.f32 %v43, %v90
  %v124 = vadd.f32 %v44, %v92
  %v125 = vrsqrt.pop %v109
  %v126 = vmul.f32 %v109, %v125
  %vm127 = vcmp.eq.f32.partialorder %v109, inf
  %v128 = vsel %vm127, %v109, %v126
  %vm129 = vcmp.eq.f32.partialorder %v109, 0.0
  %v130 = vand.u32 %v109, 2147483648
  %v131 = vsel %vm129, %v130, %v128
  %v132 = vrsqrt.pop %v110
  %v133 = vmul.f32 %v110, %v132
  %vm134 = vcmp.eq.f32.partialorder %v110, inf
  %v135 = vsel %vm134, %v110, %v133
  %vm136 = vcmp.eq.f32.partialorder %v110, 0.0
  %v137 = vand.u32 %v110, 2147483648
  %v138 = vsel %vm136, %v137, %v135
  %v139 = vrsqrt.pop %v111
  %v140 = vmul.f32 %v111, %v139
  %vm141 = vcmp.eq.f32.partialorder %v111, inf
  %v142 = vsel %vm141, %v111, %v140
  %vm143 = vcmp.eq.f32.partialorder %v111, 0.0
  %v144 = vand.u32 %v111, 2147483648
  %v145 = vsel %vm143, %v144, %v142
  %v146 = vrsqrt.pop %v112
  %v147 = vmul.f32 %v112, %v146
  %vm148 = vcmp.eq.f32.partialorder %v112, inf
  %v149 = vsel %vm148, %v112, %v147
  %vm150 = vcmp.eq.f32.partialorder %v112, 0.0
  %v151 = vand.u32 %v112, 2147483648
  %v152 = vsel %vm150, %v151, %v149
  %v153 = vrsqrt.pop %v113
  %v154 = vmul.f32 %v113, %v153
  %vm155 = vcmp.eq.f32.partialorder %v113, inf
  %v156 = vsel %vm155, %v113, %v154
  %vm157 = vcmp.eq.f32.partialorder %v113, 0.0
  %v158 = vand.u32 %v113, 2147483648
  %v159 = vsel %vm157, %v158, %v156
  %v160 = vrsqrt.pop %v114
  %v161 = vmul.f32 %v114, %v160
  %vm162 = vcmp.eq.f32.partialorder %v114, inf
  %v163 = vsel %vm162, %v114, %v161
  %vm164 = vcmp.eq.f32.partialorder %v114, 0.0
  %v165 = vand.u32 %v114, 2147483648
  %v166 = vsel %vm164, %v165, %v163
  %v167 = vrsqrt.pop %v115
  %v168 = vmul.f32 %v115, %v167
  %vm169 = vcmp.eq.f32.partialorder %v115, inf
  %v170 = vsel %vm169, %v115, %v168
  %vm171 = vcmp.eq.f32.partialorder %v115, 0.0
  %v172 = vand.u32 %v115, 2147483648
  %v173 = vsel %vm171, %v172, %v170
  %v174 = vrsqrt.pop %v116
  %v175 = vmul.f32 %v116, %v174
  %vm176 = vcmp.eq.f32.partialorder %v116, inf
  %v177 = vsel %vm176, %v116, %v175
  %vm178 = vcmp.eq.f32.partialorder %v116, 0.0
  %v179 = vand.u32 %v116, 2147483648
  %v180 = vsel %vm178, %v179, %v177
  %v181 = vrsqrt.pop %v117
  %v182 = vmul.f32 %v117, %v181
  %vm183 = vcmp.eq.f32.partialorder %v117, inf
  %v184 = vsel %vm183, %v117, %v182
  %vm185 = vcmp.eq.f32.partialorder %v117, 0.0
  %v186 = vand.u32 %v117, 2147483648
  %v187 = vsel %vm185, %v186, %v184
  %v188 = vrsqrt.pop %v118
  %v189 = vmul.f32 %v118, %v188
  %vm190 = vcmp.eq.f32.partialorder %v118, inf
  %v191 = vsel %vm190, %v118, %v189
  %vm192 = vcmp.eq.f32.partialorder %v118, 0.0
  %v193 = vand.u32 %v118, 2147483648
  %v194 = vsel %vm192, %v193, %v191
  %v195 = vrsqrt.pop %v119
  %v196 = vmul.f32 %v119, %v195
  %vm197 = vcmp.eq.f32.partialorder %v119, inf
  %v198 = vsel %vm197, %v119, %v196
  %vm199 = vcmp.eq.f32.partialorder %v119, 0.0
  %v200 = vand.u32 %v119, 2147483648
  %v201 = vsel %vm199, %v200, %v198
  %v202 = vrsqrt.pop %v120
  %v203 = vmul.f32 %v120, %v202
  %vm204 = vcmp.eq.f32.partialorder %v120, inf
  %v205 = vsel %vm204, %v120, %v203
  %vm206 = vcmp.eq.f32.partialorder %v120, 0.0
  %v207 = vand.u32 %v120, 2147483648
  %v208 = vsel %vm206, %v207, %v205
  %v209 = vrsqrt.pop %v121
  %v210 = vmul.f32 %v121, %v209
  %vm211 = vcmp.eq.f32.partialorder %v121, inf
  %v212 = vsel %vm211, %v121, %v210
  %vm213 = vcmp.eq.f32.partialorder %v121, 0.0
  %v214 = vand.u32 %v121, 2147483648
  %v215 = vsel %vm213, %v214, %v212
  %v216 = vrsqrt.pop %v122
  %v217 = vmul.f32 %v122, %v216
  %vm218 = vcmp.eq.f32.partialorder %v122, inf
  %v219 = vsel %vm218, %v122, %v217
  %vm220 = vcmp.eq.f32.partialorder %v122, 0.0
  %v221 = vand.u32 %v122, 2147483648
  %v222 = vsel %vm220, %v221, %v219
  %v223 = vrsqrt.pop %v123
  %v224 = vmul.f32 %v123, %v223
  %vm225 = vcmp.eq.f32.partialorder %v123, inf
  %v226 = vsel %vm225, %v123, %v224
  %vm227 = vcmp.eq.f32.partialorder %v123, 0.0
  %v228 = vand.u32 %v123, 2147483648
  %v229 = vsel %vm227, %v228, %v226
  %v230 = vrsqrt.pop %v124
  %v231 = vmul.f32 %v124, %v230
  %vm232 = vcmp.eq.f32.partialorder %v124, inf
  %v233 = vsel %vm232, %v124, %v231
  %vm234 = vcmp.eq.f32.partialorder %v124, 0.0
  %v235 = vand.u32 %v124, 2147483648
  %v236 = vsel %vm234, %v235, %v233
  %v237 = vlaneseq
  %v238 = vshrl.u32 %v237, 7
  %v239 = vsub.s32 0, %v238
  %v240 = vrot.slane %v27, %v239
  %v241 = vmul.f32 %v131, %v240
  %v242 = vmul.f32 %v138, %v240
  %v243 = vmul.f32 %v145, %v240
  %v244 = vmul.f32 %v152, %v240
  %v245 = vmul.f32 %v159, %v240
  %v246 = vmul.f32 %v166, %v240
  %v247 = vmul.f32 %v173, %v240
  %v248 = vmul.f32 %v180, %v240
  %v249 = vmul.f32 %v187, %v240
  %v250 = vmul.f32 %v194, %v240
  %v251 = vmul.f32 %v201, %v240
  %v252 = vmul.f32 %v208, %v240
  %v253 = vmul.f32 %v215, %v240
  %v254 = vmul.f32 %v222, %v240
  %v255 = vmul.f32 %v229, %v240
  %v256 = vmul.f32 %v236, %v240
  %v257 = vlaneseq
  %v258 = vshrl.u32 %v257, 7
  %v259 = vsub.s32 0, %v258
  %v260 = vrot.slane %v28, %v259
  %v261 = vadd.f32 %v241, %v260
  %v262 = vadd.f32 %v242, %v260
  %v263 = vadd.f32 %v243, %v260
  %v264 = vadd.f32 %v244, %v260
  %v265 = vadd.f32 %v245, %v260
  %v266 = vadd.f32 %v246, %v260
  %v267 = vadd.f32 %v247, %v260
  %v268 = vadd.f32 %v248, %v260
  %v269 = vadd.f32 %v249, %v260
  %v270 = vadd.f32 %v250, %v260
  %v271 = vadd.f32 %v251, %v260
  %v272 = vadd.f32 %v252, %v260
  %v273 = vadd.f32 %v253, %v260
  %v274 = vadd.f32 %v254, %v260
  %v275 = vadd.f32 %v255, %v260
  %v276 = vadd.f32 %v256, %v260
  %v277 = vadd.f32 %v131, 1e-06
  %v278 = vadd.f32 %v138, 1e-06
  %v279 = vadd.f32 %v145, 1e-06
  %v280 = vadd.f32 %v152, 1e-06
  %v281 = vadd.f32 %v159, 1e-06
  %v282 = vadd.f32 %v166, 1e-06
  %v283 = vadd.f32 %v173, 1e-06
  %v284 = vadd.f32 %v180, 1e-06
  %v285 = vadd.f32 %v187, 1e-06
  %v286 = vadd.f32 %v194, 1e-06
  %v287 = vadd.f32 %v201, 1e-06
  %v288 = vadd.f32 %v208, 1e-06
  %v289 = vadd.f32 %v215, 1e-06
  %v290 = vadd.f32 %v222, 1e-06
  %v291 = vadd.f32 %v229, 1e-06
  %v292 = vadd.f32 %v236, 1e-06
  %v293 = vrcp.pop %v277
  %v294 = vmul.f32 %v261, %v293
  %v295 = vrcp.pop %v278
  %v296 = vmul.f32 %v262, %v295
  %v297 = vrcp.pop %v279
  %v298 = vmul.f32 %v263, %v297
  %v299 = vrcp.pop %v280
  %v300 = vmul.f32 %v264, %v299
  %v301 = vrcp.pop %v281
  %v302 = vmul.f32 %v265, %v301
  %v303 = vrcp.pop %v282
  %v304 = vmul.f32 %v266, %v303
  %v305 = vrcp.pop %v283
  %v306 = vmul.f32 %v267, %v305
  %v307 = vrcp.pop %v284
  %v308 = vmul.f32 %v268, %v307
  %v309 = vrcp.pop %v285
  %v310 = vmul.f32 %v269, %v309
  %v311 = vrcp.pop %v286
  %v312 = vmul.f32 %v270, %v311
  %v313 = vrcp.pop %v287
  %v314 = vmul.f32 %v271, %v313
  %v315 = vrcp.pop %v288
  %v316 = vmul.f32 %v272, %v315
  %v317 = vrcp.pop %v289
  %v318 = vmul.f32 %v273, %v317
  %v319 = vrcp.pop %v290
  %v320 = vmul.f32 %v274, %v319
  %v321 = vrcp.pop %v291
  %v322 = vmul.f32 %v275, %v321
  %v323 = vrcp.pop %v292
  %v324 = vmul.f32 %v276, %v323
  %v325 = vmul.f32 %v11, %v294
  %v326 = vmul.f32 %v12, %v296
  %v327 = vmul.f32 %v13, %v298
  %v328 = vmul.f32 %v14, %v300
  %v329 = vmul.f32 %v15, %v302
  %v330 = vmul.f32 %v16, %v304
  %v331 = vmul.f32 %v17, %v306
  %v332 = vmul.f32 %v18, %v308
  %v333 = vmul.f32 %v19, %v310
  %v334 = vmul.f32 %v20, %v312
  %v335 = vmul.f32 %v21, %v314
  %v336 = vmul.f32 %v22, %v316
  %v337 = vmul.f32 %v23, %v318
  %v338 = vmul.f32 %v24, %v320
  %v339 = vmul.f32 %v25, %v322
  %v340 = vmul.f32 %v26, %v324
  %357 = vrot.lane.b32.xlu0 %v294, 8
  %v358 = vpop.permute.xlu0 %357
  %359 = vrot.lane.b32.xlu0 %v296, 8
  %v360 = vpop.permute.xlu0 %359
  %361 = vrot.lane.b32.xlu0 %v298, 8
  %v362 = vpop.permute.xlu0 %361
  %363 = vrot.lane.b32.xlu0 %v300, 8
  %v364 = vpop.permute.xlu0 %363
  %365 = vrot.lane.b32.xlu0 %v302, 8
  %v366 = vpop.permute.xlu0 %365
  %367 = vrot.lane.b32.xlu0 %v304, 8
  %v368 = vpop.permute.xlu0 %367
  %369 = vrot.lane.b32.xlu0 %v306, 8
  %v370 = vpop.permute.xlu0 %369
  %371 = vrot.lane.b32.xlu0 %v308, 8
  %v372 = vpop.permute.xlu0 %371
  %373 = vrot.lane.b32.xlu0 %v310, 8
  %v374 = vpop.permute.xlu0 %373
  %375 = vrot.lane.b32.xlu0 %v312, 8
  %v376 = vpop.permute.xlu0 %375
  %377 = vrot.lane.b32.xlu0 %v314, 8
  %v378 = vpop.permute.xlu0 %377
  %379 = vrot.lane.b32.xlu0 %v316, 8
  %v380 = vpop.permute.xlu0 %379
  %381 = vrot.lane.b32.xlu0 %v318, 8
  %v382 = vpop.permute.xlu0 %381
  %383 = vrot.lane.b32.xlu0 %v320, 8
  %v384 = vpop.permute.xlu0 %383
  %385 = vrot.lane.b32.xlu0 %v322, 8
  %v386 = vpop.permute.xlu0 %385
  %387 = vrot.lane.b32.xlu0 %v324, 8
  %v388 = vpop.permute.xlu0 %387
  %v405 = vmul.f32 %v11, %v358
  %v406 = vmul.f32 %v12, %v360
  %v407 = vmul.f32 %v13, %v362
  %v408 = vmul.f32 %v14, %v364
  %v409 = vmul.f32 %v15, %v366
  %v410 = vmul.f32 %v16, %v368
  %v411 = vmul.f32 %v17, %v370
  %v412 = vmul.f32 %v18, %v372
  %v413 = vmul.f32 %v19, %v374
  %v414 = vmul.f32 %v20, %v376
  %v415 = vmul.f32 %v21, %v378
  %v416 = vmul.f32 %v22, %v380
  %v417 = vmul.f32 %v23, %v382
  %v418 = vmul.f32 %v24, %v384
  %v419 = vmul.f32 %v25, %v386
  %v420 = vmul.f32 %v26, %v388
  %vm421 = vcmask 64512
  %v422 = vsel %vm421, %v325, %v405
  %v423 = vsel %vm421, %v326, %v406
  %v424 = vsel %vm421, %v327, %v407
  %v425 = vsel %vm421, %v328, %v408
  %v426 = vsel %vm421, %v329, %v409
  %v427 = vsel %vm421, %v330, %v410
  %v428 = vsel %vm421, %v331, %v411
  %v429 = vsel %vm421, %v332, %v412
  %v430 = vsel %vm421, %v333, %v413
  %v431 = vsel %vm421, %v334, %v414
  %v432 = vsel %vm421, %v335, %v415
  %v433 = vsel %vm421, %v336, %v416
  %v434 = vsel %vm421, %v337, %v417
  %v435 = vsel %vm421, %v338, %v418
  %v436 = vsel %vm421, %v339, %v419
  %v437 = vsel %vm421, %v340, %v420
  %v438 = vmax.f32 %v422, 0.0
  %v439 = vmax.f32 %v423, 0.0
  %v440 = vmax.f32 %v424, 0.0
  %v441 = vmax.f32 %v425, 0.0
  %v442 = vmax.f32 %v426, 0.0
  %v443 = vmax.f32 %v427, 0.0
  %v444 = vmax.f32 %v428, 0.0
  %v445 = vmax.f32 %v429, 0.0
  %v446 = vmax.f32 %v430, 0.0
  %v447 = vmax.f32 %v431, 0.0
  %v448 = vmax.f32 %v432, 0.0
  %v449 = vmax.f32 %v433, 0.0
  %v450 = vmax.f32 %v434, 0.0
  %v451 = vmax.f32 %v435, 0.0
  %v452 = vmax.f32 %v436, 0.0
  %v453 = vmax.f32 %v437, 0.0
  %vm454 = vcmask 130048
  %455 = vst.msk [vmem:[%s2] sm:$0xff] %vm454, %v438
  %456 = vst.msk [vmem:[%s2 + $0x8] sm:$0xff] %vm454, %v439
  %457 = vst.msk [vmem:[%s2 + $0x10] sm:$0xff] %vm454, %v440
  %458 = vst.msk [vmem:[%s2 + $0x18] sm:$0xff] %vm454, %v441
  %459 = vst.msk [vmem:[%s2 + $0x20] sm:$0xff] %vm454, %v442
  %460 = vst.msk [vmem:[%s2 + $0x28] sm:$0xff] %vm454, %v443
  %461 = vst.msk [vmem:[%s2 + $0x30] sm:$0xff] %vm454, %v444
  %462 = vst.msk [vmem:[%s2 + $0x38] sm:$0xff] %vm454, %v445
  %463 = vst.msk [vmem:[%s2 + $0x40] sm:$0xff] %vm454, %v446
  %464 = vst.msk [vmem:[%s2 + $0x48] sm:$0xff] %vm454, %v447
  %465 = vst.msk [vmem:[%s2 + $0x50] sm:$0xff] %vm454, %v448
  %466 = vst.msk [vmem:[%s2 + $0x58] sm:$0xff] %vm454, %v449
  %467 = vst.msk [vmem:[%s2 + $0x60] sm:$0xff] %vm454, %v450
  %468 = vst.msk [vmem:[%s2 + $0x68] sm:$0xff] %vm454, %v451
  %469 = vst.msk [vmem:[%s2 + $0x70] sm:$0xff] %vm454, %v452
  %470 = vst.msk [vmem:[%s2 + $0x78] sm:$0xff] %vm454, %v453
  // Predicated region
  $region10: #{down_forward.9} parent=0 // pred_check
    _
  $region11: #{down_forward.9} parent=0 // pred_check_branch
    %472 = sbr.rel (0) target = $region13
  $region12: #{down_forward.9} parent=0 // pred_region
    _
  $region13: #{down_forward.9} parent=0 // pred_fallthru
    _
  // Predicated region
  $region14: #{down_forward.9} parent=0 // pred_check
    _
  $region15: #{down_forward.9} parent=0 // pred_check_branch
    %474 = sbr.rel (0) target = $region17
  $region16: #{down_forward.9} parent=0 // pred_region
    _
  $region17: #{down_forward.9} parent=0 // pred_fallthru
    _

// kernel: down_forward.8
$region0: #{down_forward.8}
  #allocation0 [shape = 'u32[]', space=smem, size = 0x4, offset = 0x4, fixed_abs, tag = 'smem constant byte address 0x4 - core index']
  #allocation1 [shape = 'u32[144,128]{1,0:T(1,128)}', space=vmem, size = 0x12000, scoped, tag = 'internal scratch']
  %s0 = inlined_call_operand.vmem [shape: f32[128,72], index: 0, kind: input, shape index: {}]
  %s1 = inlined_call_operand.vmem [shape: f32[72,16], index: 1, kind: input, shape index: {}]
  %s2 = inlined_call_operand.vmem [shape: f32[1,16], index: 2, kind: input, shape index: {}]
  %s3 = inlined_call_operand.vmem [shape: f32[128,16], index: 3, kind: output, shape index: {0}]
  %s4 = inlined_call_operand.vmem [shape: f32[1,2,8], index: 4, kind: output, shape index: {1}]
  %5 = xla_tuple %s3, %s4
  %s6 = sld [smem:[#allocation0]]
  $region30: #{down_forward.8} parent=0
    _
  %s8 = ssub.s32 1, %s6
  %s9 = scalar_select 0, %s8, %s6
  // Predicated region
  $region2: #{down_forward.8} parent=0 // pred_check
    _
  $region3: #{down_forward.8} parent=0 // pred_check_branch
    %11 = sbr.rel (0) target = $region5
  $region4: #{down_forward.8} parent=0 // pred_region
    _
  $region5: #{down_forward.8} parent=0 // pred_fallthru
    _
  // Predicated region
  $region6: #{down_forward.8} parent=0 // pred_check
    _
  $region7: #{down_forward.8} parent=0 // pred_check_branch
    %13 = sbr.rel (0) target = $region9
  $region8: #{down_forward.8} parent=0 // pred_region
    _
  $region9: #{down_forward.8} parent=0 // pred_fallthru
    _
  // Predicated region
  $region10: #{down_forward.8} parent=0 // pred_check
    _
  $region11: #{down_forward.8} parent=0 // pred_check_branch
    %15 = sbr.rel (0) target = $region13
  $region12: #{down_forward.8} parent=0 // pred_region
    _
  $region13: #{down_forward.8} parent=0 // pred_fallthru
    _
  %v16 = vld [vmem:[%s0] sm:$0xff]
  %v17 = vld [vmem:[%s0 + $0x8] sm:$0xff]
  %v18 = vld [vmem:[%s0 + $0x10] sm:$0xff]
  %v19 = vld [vmem:[%s0 + $0x18] sm:$0xff]
  %v20 = vld [vmem:[%s0 + $0x20] sm:$0xff]
  %v21 = vld [vmem:[%s0 + $0x28] sm:$0xff]
  %v22 = vld [vmem:[%s0 + $0x30] sm:$0xff]
  %v23 = vld [vmem:[%s0 + $0x38] sm:$0xff]
  %v24 = vld [vmem:[%s0 + $0x40] sm:$0xff]
  %v25 = vld [vmem:[%s0 + $0x48] sm:$0xff]
  %v26 = vld [vmem:[%s0 + $0x50] sm:$0xff]
  %v27 = vld [vmem:[%s0 + $0x58] sm:$0xff]
  %v28 = vld [vmem:[%s0 + $0x60] sm:$0xff]
  %v29 = vld [vmem:[%s0 + $0x68] sm:$0xff]
  %v30 = vld [vmem:[%s0 + $0x70] sm:$0xff]
  %v31 = vld [vmem:[%s0 + $0x78] sm:$0xff]
  %v32 = vld [vmem:[%s1] sm:$0xff]
  %v33 = vld [vmem:[%s1 + $0x8] sm:$0xff]
  %v34 = vld [vmem:[%s1 + $0x10] sm:$0xff]
  %v35 = vld [vmem:[%s1 + $0x18] sm:$0xff]
  %v36 = vld [vmem:[%s1 + $0x20] sm:$0xff]
  %v37 = vld [vmem:[%s1 + $0x28] sm:$0xff]
  %v38 = vld [vmem:[%s1 + $0x30] sm:$0xff]
  %v39 = vld [vmem:[%s1 + $0x38] sm:$0xff]
  %v40 = vld [vmem:[%s1 + $0x40] sm:$0xff]
  %v41 = vld [vmem:[%s2] sm:$0x1]
  %v43 = vlaneseq
  %v44 = vshrl.u32 %v43, 7
  %v45 = vsub.s32 0, %v44
  %v46 = vrot.slane %v41, %v45
  %vm48 = vcmask 588800
  %v50 = vsel %vm48, %v16, 0
  %v53 = vsel %vm48, %v17, 0
  %v56 = vsel %vm48, %v18, 0
  %v59 = vsel %vm48, %v19, 0
  %v62 = vsel %vm48, %v20, 0
  %v65 = vsel %vm48, %v21, 0
  %v68 = vsel %vm48, %v22, 0
  %v71 = vsel %vm48, %v23, 0
  %v74 = vsel %vm48, %v24, 0
  %v77 = vsel %vm48, %v25, 0
  %v80 = vsel %vm48, %v26, 0
  %v83 = vsel %vm48, %v27, 0
  %v86 = vsel %vm48, %v28, 0
  %v89 = vsel %vm48, %v29, 0
  %v92 = vsel %vm48, %v30, 0
  %v95 = vsel %vm48, %v31, 0
  %97 = vmatprep.subr.mxu0 0.0
  %98 = vmatpush1.msra.mxu0 %v32
  %99 = vmatprep.subr.mxu0 0.0
  %100 = vmatpush1.msra.mxu0 %v33
  %101 = vmatprep.subr.mxu0 0.0
  %102 = vmatpush1.msra.mxu0 %v34
  %103 = vmatprep.subr.mxu0 0.0
  %104 = vmatpush1.msra.mxu0 %v35
  %105 = vmatprep.subr.mxu0 0.0
  %106 = vmatpush1.msra.mxu0 %v36
  %107 = vmatprep.subr.mxu0 0.0
  %108 = vmatpush1.msra.mxu0 %v37
  %109 = vmatprep.subr.mxu0 0.0
  %110 = vmatpush1.msra.mxu0 %v38
  %111 = vmatprep.subr.mxu0 0.0
  %112 = vmatpush1.msra.mxu0 %v39
  %113 = vmatprep.subr.mxu0 0.0
  %114 = vmatpush1.msra.mxu0 %v40
  %115 = vmatprep.subr.mxu0 0.0
  %116 = vmatpush1.msra.mxu0 0.0
  %117 = vmatprep.subr.mxu0 0.0
  %118 = vmatpush1.msra.mxu0 0.0
  %119 = vmatprep.subr.mxu0 0.0
  %120 = vmatpush1.msra.mxu0 0.0
  %121 = vmatprep.subr.mxu0 0.0
  %122 = vmatpush1.msra.mxu0 0.0
  %123 = vmatprep.subr.mxu0 0.0
  %124 = vmatpush1.msra.mxu0 0.0
  %125 = vmatprep.subr.mxu0 0.0
  %126 = vmatpush1.msra.mxu0 0.0
  %127 = vmatprep.subr.mxu0 0.0
  %128 = vmatpush1.msra.mxu0 0.0
  %129 = vmatprep.subr.mxu0 0.0
  %130 = vmatpush1.msra.mxu0 0.0
  %131 = vmatprep.subr.mxu0 0.0
  %132 = vmatpush1.msra.mxu0 0.0
  %133 = vmatprep.subr.mxu0 0.0
  %134 = vmatpush1.msra.mxu0 0.0
  %135 = vmatprep.subr.mxu0 0.0
  %136 = vmatpush1.msra.mxu0 0.0
  %137 = vmatprep.subr.mxu0 0.0
  %138 = vmatpush1.msra.mxu0 0.0
  %139 = vmatprep.subr.mxu0 0.0
  %140 = vmatpush1.msra.mxu0 0.0
  %141 = vmatprep.subr.mxu0 0.0
  %142 = vmatpush1.msra.mxu0 0.0
  %143 = vmatprep.subr.mxu0 0.0
  %144 = vmatpush1.msra.mxu0 0.0
  %145 = vmatprep.subr.mxu0 0.0
  %146 = vmatpush1.msra.mxu0 0.0
  %147 = vmatprep.subr.mxu0 0.0
  %148 = vmatpush1.msra.mxu0 0.0
  %149 = vmatprep.subr.mxu0 0.0
  %150 = vmatpush1.msra.mxu0 0.0
  %151 = vmatprep.subr.mxu0 0.0
  %152 = vmatpush1.msra.mxu0 0.0
  %153 = vmatprep.subr.mxu0 0.0
  %154 = vmatpush1.msra.mxu0 0.0
  %155 = vmatprep.subr.mxu0 0.0
  %156 = vmatpush1.msra.mxu0 0.0
  %157 = vmatprep.subr.mxu0 0.0
  %158 = vmatpush1.msra.mxu0 0.0
  %159 = vmatprep.subr.mxu0 0.0
  %160 = vmatpush1.msra.mxu0 0.0
  %161 = vmatprep.mubr.f32.mxu0 0.0
  %162 = vmatmul.mubr.f32.gmra.mrb[0].mxu0 %v50
  %v163 = vpop.f32.mrb[0].mxu0
  %v164 = vadd.f32 %v46, %v163
  %v165 = vpop.f32.mrb[0].mxu0
  %166 = vmatprep.mubr.f32.mxu0 0.0
  %167 = vmatmul.mubr.f32.gmra.mrb[0].mxu0 %v53
  %v168 = vpop.f32.mrb[0].mxu0
  %v169 = vadd.f32 %v46, %v168
  %v170 = vpop.f32.mrb[0].mxu0
  %171 = vmatprep.mubr.f32.mxu0 0.0
  %172 = vmatmul.mubr.f32.gmra.mrb[0].mxu0 %v56
  %v173 = vpop.f32.mrb[0].mxu0
  %v174 = vadd.f32 %v46, %v173
  %v175 = vpop.f32.mrb[0].mxu0
  %176 = vmatprep.mubr.f32.mxu0 0.0
  %177 = vmatmul.mubr.f32.gmra.mrb[0].mxu0 %v59
  %v178 = vpop.f32.mrb[0].mxu0
  %v179 = vadd.f32 %v46, %v178
  %v180 = vpop.f32.mrb[0].mxu0
  %181 = vmatprep.mubr.f32.mxu0 0.0
  %182 = vmatmul.mubr.f32.gmra.mrb[0].mxu0 %v62
  %v183 = vpop.f32.mrb[0].mxu0
  %v184 = vadd.f32 %v46, %v183
  %v185 = vpop.f32.mrb[0].mxu0
  %186 = vmatprep.mubr.f32.mxu0 0.0
  %187 = vmatmul.mubr.f32.gmra.mrb[0].mxu0 %v65
  %v188 = vpop.f32.mrb[0].mxu0
  %v189 = vadd.f32 %v46, %v188
  %v190 = vpop.f32.mrb[0].mxu0
  %191 = vmatprep.mubr.f32.mxu0 0.0
  %192 = vmatmul.mubr.f32.gmra.mrb[0].mxu0 %v68
  %v193 = vpop.f32.mrb[0].mxu0
  %v194 = vadd.f32 %v46, %v193
  %v195 = vpop.f32.mrb[0].mxu0
  %196 = vmatprep.mubr.f32.mxu0 0.0
  %197 = vmatmul.mubr.f32.gmra.mrb[0].mxu0 %v71
  %v198 = vpop.f32.mrb[0].mxu0
  %v199 = vadd.f32 %v46, %v198
  %v200 = vpop.f32.mrb[0].mxu0
  %201 = vmatprep.mubr.f32.mxu0 0.0
  %202 = vmatmul.mubr.f32.gmra.mrb[0].mxu0 %v74
  %v203 = vpop.f32.mrb[0].mxu0
  %v204 = vadd.f32 %v46, %v203
  %v205 = vpop.f32.mrb[0].mxu0
  %206 = vmatprep.mubr.f32.mxu0 0.0
  %207 = vmatmul.mubr.f32.gmra.mrb[0].mxu0 %v77
  %v208 = vpop.f32.mrb[0].mxu0
  %v209 = vadd.f32 %v46, %v208
  %v210 = vpop.f32.mrb[0].mxu0
  %211 = vmatprep.mubr.f32.mxu0 0.0
  %212 = vmatmul.mubr.f32.gmra.mrb[0].mxu0 %v80
  %v213 = vpop.f32.mrb[0].mxu0
  %v214 = vadd.f32 %v46, %v213
  %v215 = vpop.f32.mrb[0].mxu0
  %216 = vmatprep.mubr.f32.mxu0 0.0
  %217 = vmatmul.mubr.f32.gmra.mrb[0].mxu0 %v83
  %v218 = vpop.f32.mrb[0].mxu0
  %v219 = vadd.f32 %v46, %v218
  %v220 = vpop.f32.mrb[0].mxu0
  %221 = vmatprep.mubr.f32.mxu0 0.0
  %222 = vmatmul.mubr.f32.gmra.mrb[0].mxu0 %v86
  %v223 = vpop.f32.mrb[0].mxu0
  %v224 = vadd.f32 %v46, %v223
  %v225 = vpop.f32.mrb[0].mxu0
  %226 = vmatprep.mubr.f32.mxu0 0.0
  %227 = vmatmul.mubr.f32.gmra.mrb[0].mxu0 %v89
  %v228 = vpop.f32.mrb[0].mxu0
  %v229 = vadd.f32 %v46, %v228
  %v230 = vpop.f32.mrb[0].mxu0
  %231 = vmatprep.mubr.f32.mxu0 0.0
  %232 = vmatmul.mubr.f32.gmra.mrb[0].mxu0 %v92
  %v233 = vpop.f32.mrb[0].mxu0
  %v234 = vadd.f32 %v46, %v233
  %v235 = vpop.f32.mrb[0].mxu0
  %236 = vmatprep.mubr.f32.mxu0 0.0
  %237 = vmatmul.mubr.f32.gmra.mrb[0].mxu0 %v95
  %v238 = vpop.f32.mrb[0].mxu0
  %v239 = vadd.f32 %v46, %v238
  %v240 = vpop.f32.mrb[0].mxu0
  %241 = vdwg.mxu0
  %vm242 = vcmask 130048
  %243 = vst.msk [vmem:[%s3] sm:$0xff] %vm242, %v164
  %244 = vst.msk [vmem:[%s3 + $0x8] sm:$0xff] %vm242, %v169
  %245 = vst.msk [vmem:[%s3 + $0x10] sm:$0xff] %vm242, %v174
  %246 = vst.msk [vmem:[%s3 + $0x18] sm:$0xff] %vm242, %v179
  %247 = vst.msk [vmem:[%s3 + $0x20] sm:$0xff] %vm242, %v184
  %248 = vst.msk [vmem:[%s3 + $0x28] sm:$0xff] %vm242, %v189
  %249 = vst.msk [vmem:[%s3 + $0x30] sm:$0xff] %vm242, %v194
  %250 = vst.msk [vmem:[%s3 + $0x38] sm:$0xff] %vm242, %v199
  %251 = vst.msk [vmem:[%s3 + $0x40] sm:$0xff] %vm242, %v204
  %252 = vst.msk [vmem:[%s3 + $0x48] sm:$0xff] %vm242, %v209
  %253 = vst.msk [vmem:[%s3 + $0x50] sm:$0xff] %vm242, %v214
  %254 = vst.msk [vmem:[%s3 + $0x58] sm:$0xff] %vm242, %v219
  %255 = vst.msk [vmem:[%s3 + $0x60] sm:$0xff] %vm242, %v224
  %256 = vst.msk [vmem:[%s3 + $0x68] sm:$0xff] %vm242, %v229
  %257 = vst.msk [vmem:[%s3 + $0x70] sm:$0xff] %vm242, %v234
  %258 = vst.msk [vmem:[%s3 + $0x78] sm:$0xff] %vm242, %v239
  %v259 = vmul.f32 %v164, %v164
  %v260 = vmul.f32 %v169, %v169
  %v261 = vmul.f32 %v174, %v174
  %v262 = vmul.f32 %v179, %v179
  %v263 = vmul.f32 %v184, %v184
  %v264 = vmul.f32 %v189, %v189
  %v265 = vmul.f32 %v194, %v194
  %v266 = vmul.f32 %v199, %v199
  %v267 = vmul.f32 %v204, %v204
  %v268 = vmul.f32 %v209, %v209
  %v269 = vmul.f32 %v214, %v214
  %v270 = vmul.f32 %v219, %v219
  %v271 = vmul.f32 %v224, %v224
  %v272 = vmul.f32 %v229, %v229
  %v273 = vmul.f32 %v234, %v234
  %v274 = vmul.f32 %v239, %v239
  %291 = vrot.lane.b32.xlu0 %v259, 120
  %v292 = vpop.permute.xlu0 %291
  %293 = vrot.lane.b32.xlu0 %v260, 120
  %v294 = vpop.permute.xlu0 %293
  %295 = vrot.lane.b32.xlu0 %v261, 120
  %v296 = vpop.permute.xlu0 %295
  %297 = vrot.lane.b32.xlu0 %v262, 120
  %v298 = vpop.permute.xlu0 %297
  %299 = vrot.lane.b32.xlu0 %v263, 120
  %v300 = vpop.permute.xlu0 %299
  %301 = vrot.lane.b32.xlu0 %v264, 120
  %v302 = vpop.permute.xlu0 %301
  %303 = vrot.lane.b32.xlu0 %v265, 120
  %v304 = vpop.permute.xlu0 %303
  %305 = vrot.lane.b32.xlu0 %v266, 120
  %v306 = vpop.permute.xlu0 %305
  %307 = vrot.lane.b32.xlu0 %v267, 120
  %v308 = vpop.permute.xlu0 %307
  %309 = vrot.lane.b32.xlu0 %v268, 120
  %v310 = vpop.permute.xlu0 %309
  %311 = vrot.lane.b32.xlu0 %v269, 120
  %v312 = vpop.permute.xlu0 %311
  %313 = vrot.lane.b32.xlu0 %v270, 120
  %v314 = vpop.permute.xlu0 %313
  %315 = vrot.lane.b32.xlu0 %v271, 120
  %v316 = vpop.permute.xlu0 %315
  %317 = vrot.lane.b32.xlu0 %v272, 120
  %v318 = vpop.permute.xlu0 %317
  %319 = vrot.lane.b32.xlu0 %v273, 120
  %v320 = vpop.permute.xlu0 %319
  %321 = vrot.lane.b32.xlu0 %v274, 120
  %v322 = vpop.permute.xlu0 %321
  %v339 = vadd.f32 %v259, %v292
  %v340 = vadd.f32 %v260, %v294
  %v341 = vadd.f32 %v261, %v296
  %v342 = vadd.f32 %v262, %v298
  %v343 = vadd.f32 %v263, %v300
  %v344 = vadd.f32 %v264, %v302
  %v345 = vadd.f32 %v265, %v304
  %v346 = vadd.f32 %v266, %v306
  %v347 = vadd.f32 %v267, %v308
  %v348 = vadd.f32 %v268, %v310
  %v349 = vadd.f32 %v269, %v312
  %v350 = vadd.f32 %v270, %v314
  %v351 = vadd.f32 %v271, %v316
  %v352 = vadd.f32 %v272, %v318
  %v353 = vadd.f32 %v273, %v320
  %v354 = vadd.f32 %v274, %v322
  %v355 = vrsqrt.pop %v339
  %v356 = vmul.f32 %v339, %v355
  %vm357 = vcmp.eq.f32.partialorder %v339, inf
  %v358 = vsel %vm357, %v339, %v356
  %vm359 = vcmp.eq.f32.partialorder %v339, 0.0
  %v360 = vand.u32 %v339, 2147483648
  %v361 = vsel %vm359, %v360, %v358
  %v362 = vrsqrt.pop %v340
  %v363 = vmul.f32 %v340, %v362
  %vm364 = vcmp.eq.f32.partialorder %v340, inf
  %v365 = vsel %vm364, %v340, %v363
  %vm366 = vcmp.eq.f32.partialorder %v340, 0.0
  %v367 = vand.u32 %v340, 2147483648
  %v368 = vsel %vm366, %v367, %v365
  %v369 = vrsqrt.pop %v341
  %v370 = vmul.f32 %v341, %v369
  %vm371 = vcmp.eq.f32.partialorder %v341, inf
  %v372 = vsel %vm371, %v341, %v370
  %vm373 = vcmp.eq.f32.partialorder %v341, 0.0
  %v374 = vand.u32 %v341, 2147483648
  %v375 = vsel %vm373, %v374, %v372
  %v376 = vrsqrt.pop %v342
  %v377 = vmul.f32 %v342, %v376
  %vm378 = vcmp.eq.f32.partialorder %v342, inf
  %v379 = vsel %vm378, %v342, %v377
  %vm380 = vcmp.eq.f32.partialorder %v342, 0.0
  %v381 = vand.u32 %v342, 2147483648
  %v382 = vsel %vm380, %v381, %v379
  %v383 = vrsqrt.pop %v343
  %v384 = vmul.f32 %v343, %v383
  %vm385 = vcmp.eq.f32.partialorder %v343, inf
  %v386 = vsel %vm385, %v343, %v384
  %vm387 = vcmp.eq.f32.partialorder %v343, 0.0
  %v388 = vand.u32 %v343, 2147483648
  %v389 = vsel %vm387, %v388, %v386
  %v390 = vrsqrt.pop %v344
  %v391 = vmul.f32 %v344, %v390
  %vm392 = vcmp.eq.f32.partialorder %v344, inf
  %v393 = vsel %vm392, %v344, %v391
  %vm394 = vcmp.eq.f32.partialorder %v344, 0.0
  %v395 = vand.u32 %v344, 2147483648
  %v396 = vsel %vm394, %v395, %v393
  %v397 = vrsqrt.pop %v345
  %v398 = vmul.f32 %v345, %v397
  %vm399 = vcmp.eq.f32.partialorder %v345, inf
  %v400 = vsel %vm399, %v345, %v398
  %vm401 = vcmp.eq.f32.partialorder %v345, 0.0
  %v402 = vand.u32 %v345, 2147483648
  %v403 = vsel %vm401, %v402, %v400
  %v404 = vrsqrt.pop %v346
  %v405 = vmul.f32 %v346, %v404
  %vm406 = vcmp.eq.f32.partialorder %v346, inf
  %v407 = vsel %vm406, %v346, %v405
  %vm408 = vcmp.eq.f32.partialorder %v346, 0.0
  %v409 = vand.u32 %v346, 2147483648
  %v410 = vsel %vm408, %v409, %v407
  %v411 = vrsqrt.pop %v347
  %v412 = vmul.f32 %v347, %v411
  %vm413 = vcmp.eq.f32.partialorder %v347, inf
  %v414 = vsel %vm413, %v347, %v412
  %vm415 = vcmp.eq.f32.partialorder %v347, 0.0
  %v416 = vand.u32 %v347, 2147483648
  %v417 = vsel %vm415, %v416, %v414
  %v418 = vrsqrt.pop %v348
  %v419 = vmul.f32 %v348, %v418
  %vm420 = vcmp.eq.f32.partialorder %v348, inf
  %v421 = vsel %vm420, %v348, %v419
  %vm422 = vcmp.eq.f32.partialorder %v348, 0.0
  %v423 = vand.u32 %v348, 2147483648
  %v424 = vsel %vm422, %v423, %v421
  %v425 = vrsqrt.pop %v349
  %v426 = vmul.f32 %v349, %v425
  %vm427 = vcmp.eq.f32.partialorder %v349, inf
  %v428 = vsel %vm427, %v349, %v426
  %vm429 = vcmp.eq.f32.partialorder %v349, 0.0
  %v430 = vand.u32 %v349, 2147483648
  %v431 = vsel %vm429, %v430, %v428
  %v432 = vrsqrt.pop %v350
  %v433 = vmul.f32 %v350, %v432
  %vm434 = vcmp.eq.f32.partialorder %v350, inf
  %v435 = vsel %vm434, %v350, %v433
  %vm436 = vcmp.eq.f32.partialorder %v350, 0.0
  %v437 = vand.u32 %v350, 2147483648
  %v438 = vsel %vm436, %v437, %v435
  %v439 = vrsqrt.pop %v351
  %v440 = vmul.f32 %v351, %v439
  %vm441 = vcmp.eq.f32.partialorder %v351, inf
  %v442 = vsel %vm441, %v351, %v440
  %vm443 = vcmp.eq.f32.partialorder %v351, 0.0
  %v444 = vand.u32 %v351, 2147483648
  %v445 = vsel %vm443, %v444, %v442
  %v446 = vrsqrt.pop %v352
  %v447 = vmul.f32 %v352, %v446
  %vm448 = vcmp.eq.f32.partialorder %v352, inf
  %v449 = vsel %vm448, %v352, %v447
  %vm450 = vcmp.eq.f32.partialorder %v352, 0.0
  %v451 = vand.u32 %v352, 2147483648
  %v452 = vsel %vm450, %v451, %v449
  %v453 = vrsqrt.pop %v353
  %v454 = vmul.f32 %v353, %v453
  %vm455 = vcmp.eq.f32.partialorder %v353, inf
  %v456 = vsel %vm455, %v353, %v454
  %vm457 = vcmp.eq.f32.partialorder %v353, 0.0
  %v458 = vand.u32 %v353, 2147483648
  %v459 = vsel %vm457, %v458, %v456
  %v460 = vrsqrt.pop %v354
  %v461 = vmul.f32 %v354, %v460
  %vm462 = vcmp.eq.f32.partialorder %v354, inf
  %v463 = vsel %vm462, %v354, %v461
  %vm464 = vcmp.eq.f32.partialorder %v354, 0.0
  %v465 = vand.u32 %v354, 2147483648
  %v466 = vsel %vm464, %v465, %v463
  %vm467 = vcmask 64512
  %v468 = vsel %vm467, %v361, 0.0
  %v469 = vsel %vm467, %v368, 0.0
  %v470 = vadd.f32 %v468, %v469
  %v471 = vsel %vm467, %v375, 0.0
  %v472 = vadd.f32 %v470, %v471
  %v473 = vsel %vm467, %v382, 0.0
  %v474 = vadd.f32 %v472, %v473
  %v475 = vsel %vm467, %v389, 0.0
  %v476 = vadd.f32 %v474, %v475
  %v477 = vsel %vm467, %v396, 0.0
  %v478 = vadd.f32 %v476, %v477
  %v479 = vsel %vm467, %v403, 0.0
  %v480 = vadd.f32 %v478, %v479
  %v481 = vsel %vm467, %v410, 0.0
  %v482 = vadd.f32 %v480, %v481
  %v483 = vsel %vm467, %v417, 0.0
  %v484 = vadd.f32 %v482, %v483
  %v485 = vsel %vm467, %v424, 0.0
  %v486 = vadd.f32 %v484, %v485
  %v487 = vsel %vm467, %v431, 0.0
  %v488 = vadd.f32 %v486, %v487
  %v489 = vsel %vm467, %v438, 0.0
  %v490 = vadd.f32 %v488, %v489
  %v491 = vsel %vm467, %v445, 0.0
  %v492 = vadd.f32 %v490, %v491
  %v493 = vsel %vm467, %v452, 0.0
  %v494 = vadd.f32 %v492, %v493
  %v495 = vsel %vm467, %v459, 0.0
  %v496 = vadd.f32 %v494, %v495
  %v497 = vsel %vm467, %v466, 0.0
  %v498 = vadd.f32 %v496, %v497
  %v499 = vrot.slane %v498, 4
  %v500 = vadd.f32 %v498, %v499
  %v501 = vrot.slane %v500, 2
  %v502 = vadd.f32 %v500, %v501
  %v503 = vrot.slane %v502, 1
  %v504 = vadd.f32 %v502, %v503
  %v505 = vsel %vm467, %v339, 0.0
  %v506 = vsel %vm467, %v340, 0.0
  %v507 = vadd.f32 %v505, %v506
  %v508 = vsel %vm467, %v341, 0.0
  %v509 = vadd.f32 %v507, %v508
  %v510 = vsel %vm467, %v342, 0.0
  %v511 = vadd.f32 %v509, %v510
  %v512 = vsel %vm467, %v343, 0.0
  %v513 = vadd.f32 %v511, %v512
  %v514 = vsel %vm467, %v344, 0.0
  %v515 = vadd.f32 %v513, %v514
  %v516 = vsel %vm467, %v345, 0.0
  %v517 = vadd.f32 %v515, %v516
  %v518 = vsel %vm467, %v346, 0.0
  %v519 = vadd.f32 %v517, %v518
  %v520 = vsel %vm467, %v347, 0.0
  %v521 = vadd.f32 %v519, %v520
  %v522 = vsel %vm467, %v348, 0.0
  %v523 = vadd.f32 %v521, %v522
  %v524 = vsel %vm467, %v349, 0.0
  %v525 = vadd.f32 %v523, %v524
  %v526 = vsel %vm467, %v350, 0.0
  %v527 = vadd.f32 %v525, %v526
  %v528 = vsel %vm467, %v351, 0.0
  %v529 = vadd.f32 %v527, %v528
  %v530 = vsel %vm467, %v352, 0.0
  %v531 = vadd.f32 %v529, %v530
  %v532 = vsel %vm467, %v353, 0.0
  %v533 = vadd.f32 %v531, %v532
  %v534 = vsel %vm467, %v354, 0.0
  %v535 = vadd.f32 %v533, %v534
  %v536 = vrot.slane %v535, 4
  %v537 = vadd.f32 %v535, %v536
  %v538 = vrot.slane %v537, 2
  %v539 = vadd.f32 %v537, %v538
  %v540 = vrot.slane %v539, 1
  %v541 = vadd.f32 %v539, %v540
  %vm542 = vcmask 1040384
  %v543 = vsel %vm542, %v504, %v541
  %vm544 = vcmask 58368
  %545 = vst.msk [vmem:[%s4] sm:$0x3] %vm544, %v543
  // Predicated region
  $region14: #{down_forward.8} parent=0 // pred_check
    _
  $region15: #{down_forward.8} parent=0 // pred_check_branch
    %547 = sbr.rel (0) target = $region17
  $region16: #{down_forward.8} parent=0 // pred_region
    _
  $region17: #{down_forward.8} parent=0 // pred_fallthru
    _
  // Predicated region
  $region18: #{down_forward.8} parent=0 // pred_check
    _
  $region19: #{down_forward.8} parent=0 // pred_check_branch
    %549 = sbr.rel (0) target = $region21
  $region20: #{down_forward.8} parent=0 // pred_region
    _
  $region21: #{down_forward.8} parent=0 // pred_fallthru
    _
  // Predicated region
  $region22: #{down_forward.8} parent=0 // pred_check
    _
  $region23: #{down_forward.8} parent=0 // pred_check_branch
    %551 = sbr.rel (0) target = $region25
  $region24: #{down_forward.8} parent=0 // pred_region
    _
  $region25: #{down_forward.8} parent=0 // pred_fallthru
    _
  // Predicated region
  $region26: #{down_forward.8} parent=0 // pred_check
    _
  $region27: #{down_forward.8} parent=0 // pred_check_branch
    %553 = sbr.rel (0) target = $region29
  $region28: #{down_forward.8} parent=0 // pred_region
    _
  $region29: #{down_forward.8} parent=0 // pred_fallthru
    _

// kernel: down_forward.10
$region0: #{down_forward.10}
  #allocation0 [shape = 'u32[]', space=smem, size = 0x4, offset = 0x4, fixed_abs, tag = 'smem constant byte address 0x4 - core index']
  #allocation1 [shape = 'u32[144,128]{1,0:T(1,128)}', space=vmem, size = 0x12000, scoped, tag = 'internal scratch']
  %s0 = inlined_call_operand.vmem [shape: f32[128,144], index: 0, kind: input, shape index: {}]
  %s1 = inlined_call_operand.vmem [shape: f32[144,16], index: 1, kind: input, shape index: {}]
  %s2 = inlined_call_operand.vmem [shape: f32[1,16], index: 2, kind: input, shape index: {}]
  %s3 = inlined_call_operand.vmem [shape: f32[128,16], index: 3, kind: output, shape index: {0}]
  %s4 = inlined_call_operand.vmem [shape: f32[1,2,8], index: 4, kind: output, shape index: {1}]
  %5 = xla_tuple %s3, %s4
  %s6 = sld [smem:[#allocation0]]
  $region30: #{down_forward.10} parent=0
    _
  %s8 = ssub.s32 1, %s6
  %s9 = scalar_select 0, %s8, %s6
  // Predicated region
  $region2: #{down_forward.10} parent=0 // pred_check
    _
  $region3: #{down_forward.10} parent=0 // pred_check_branch
    %11 = sbr.rel (0) target = $region5
  $region4: #{down_forward.10} parent=0 // pred_region
    _
  $region5: #{down_forward.10} parent=0 // pred_fallthru
    _
  // Predicated region
  $region6: #{down_forward.10} parent=0 // pred_check
    _
  $region7: #{down_forward.10} parent=0 // pred_check_branch
    %13 = sbr.rel (0) target = $region9
  $region8: #{down_forward.10} parent=0 // pred_region
    _
  $region9: #{down_forward.10} parent=0 // pred_fallthru
    _
  // Predicated region
  $region10: #{down_forward.10} parent=0 // pred_check
    _
  $region11: #{down_forward.10} parent=0 // pred_check_branch
    %15 = sbr.rel (0) target = $region13
  $region12: #{down_forward.10} parent=0 // pred_region
    _
  $region13: #{down_forward.10} parent=0 // pred_fallthru
    _
  %v16 = vld [vmem:[%s0] sm:$0xff]
  %v17 = vld [vmem:[%s0 + $0x8] sm:$0xff]
  %v18 = vld [vmem:[%s0 + $0x10] sm:$0xff]
  %v19 = vld [vmem:[%s0 + $0x18] sm:$0xff]
  %v20 = vld [vmem:[%s0 + $0x20] sm:$0xff]
  %v21 = vld [vmem:[%s0 + $0x28] sm:$0xff]
  %v22 = vld [vmem:[%s0 + $0x30] sm:$0xff]
  %v23 = vld [vmem:[%s0 + $0x38] sm:$0xff]
  %v24 = vld [vmem:[%s0 + $0x40] sm:$0xff]
  %v25 = vld [vmem:[%s0 + $0x48] sm:$0xff]
  %v26 = vld [vmem:[%s0 + $0x50] sm:$0xff]
  %v27 = vld [vmem:[%s0 + $0x58] sm:$0xff]
  %v28 = vld [vmem:[%s0 + $0x60] sm:$0xff]
  %v29 = vld [vmem:[%s0 + $0x68] sm:$0xff]
  %v30 = vld [vmem:[%s0 + $0x70] sm:$0xff]
  %v31 = vld [vmem:[%s0 + $0x78] sm:$0xff]
  %v32 = vld [vmem:[%s0 + $0x80] sm:$0xff]
  %v33 = vld [vmem:[%s0 + $0x88] sm:$0xff]
  %v34 = vld [vmem:[%s0 + $0x90] sm:$0xff]
  %v35 = vld [vmem:[%s0 + $0x98] sm:$0xff]
  %v36 = vld [vmem:[%s0 + $0xa0] sm:$0xff]
  %v37 = vld [vmem:[%s0 + $0xa8] sm:$0xff]
  %v38 = vld [vmem:[%s0 + $0xb0] sm:$0xff]
  %v39 = vld [vmem:[%s0 + $0xb8] sm:$0xff]
  %v40 = vld [vmem:[%s0 + $0xc0] sm:$0xff]
  %v41 = vld [vmem:[%s0 + $0xc8] sm:$0xff]
  %v42 = vld [vmem:[%s0 + $0xd0] sm:$0xff]
  %v43 = vld [vmem:[%s0 + $0xd8] sm:$0xff]
  %v44 = vld [vmem:[%s0 + $0xe0] sm:$0xff]
  %v45 = vld [vmem:[%s0 + $0xe8] sm:$0xff]
  %v46 = vld [vmem:[%s0 + $0xf0] sm:$0xff]
  %v47 = vld [vmem:[%s0 + $0xf8] sm:$0xff]
  %v48 = vld [vmem:[%s1] sm:$0xff]
  %v49 = vld [vmem:[%s1 + $0x8] sm:$0xff]
  %v50 = vld [vmem:[%s1 + $0x10] sm:$0xff]
  %v51 = vld [vmem:[%s1 + $0x18] sm:$0xff]
  %v52 = vld [vmem:[%s1 + $0x20] sm:$0xff]
  %v53 = vld [vmem:[%s1 + $0x28] sm:$0xff]
  %v54 = vld [vmem:[%s1 + $0x30] sm:$0xff]
  %v55 = vld [vmem:[%s1 + $0x38] sm:$0xff]
  %v56 = vld [vmem:[%s1 + $0x40] sm:$0xff]
  %v57 = vld [vmem:[%s1 + $0x48] sm:$0xff]
  %v58 = vld [vmem:[%s1 + $0x50] sm:$0xff]
  %v59 = vld [vmem:[%s1 + $0x58] sm:$0xff]
  %v60 = vld [vmem:[%s1 + $0x60] sm:$0xff]
  %v61 = vld [vmem:[%s1 + $0x68] sm:$0xff]
  %v62 = vld [vmem:[%s1 + $0x70] sm:$0xff]
  %v63 = vld [vmem:[%s1 + $0x78] sm:$0xff]
  %v64 = vld [vmem:[%s1 + $0x80] sm:$0xff]
  %v65 = vld [vmem:[%s1 + $0x88] sm:$0xff]
  %v66 = vld [vmem:[%s2] sm:$0x1]
  %v68 = vlaneseq
  %v69 = vshrl.u32 %v68, 7
  %v70 = vsub.s32 0, %v69
  %v71 = vrot.slane %v66, %v70
  %vm73 = vcmask 130048
  %v75 = vsel %vm73, %v17, 0
  %v78 = vsel %vm73, %v19, 0
  %v81 = vsel %vm73, %v21, 0
  %v84 = vsel %vm73, %v23, 0
  %v87 = vsel %vm73, %v25, 0
  %v90 = vsel %vm73, %v27, 0
  %v93 = vsel %vm73, %v29, 0
  %v96 = vsel %vm73, %v31, 0
  %v99 = vsel %vm73, %v33, 0
  %v102 = vsel %vm73, %v35, 0
  %v105 = vsel %vm73, %v37, 0
  %v108 = vsel %vm73, %v39, 0
  %v111 = vsel %vm73, %v41, 0
  %v114 = vsel %vm73, %v43, 0
  %v117 = vsel %vm73, %v45, 0
  %v120 = vsel %vm73, %v47, 0
  %122 = vmatprep.subr.mxu0 0.0
  %123 = vmatpush1.msra.mxu0 %v48
  %124 = vmatprep.subr.mxu0 0.0
  %125 = vmatpush1.msra.mxu0 %v49
  %126 = vmatprep.subr.mxu0 0.0
  %127 = vmatpush1.msra.mxu0 %v50
  %128 = vmatprep.subr.mxu0 0.0
  %129 = vmatpush1.msra.mxu0 %v51
  %130 = vmatprep.subr.mxu0 0.0
  %131 = vmatpush1.msra.mxu0 %v52
  %132 = vmatprep.subr.mxu0 0.0
  %133 = vmatpush1.msra.mxu0 %v53
  %134 = vmatprep.subr.mxu0 0.0
  %135 = vmatpush1.msra.mxu0 %v54
  %136 = vmatprep.subr.mxu0 0.0
  %137 = vmatpush1.msra.mxu0 %v55
  %138 = vmatprep.subr.mxu0 0.0
  %139 = vmatpush1.msra.mxu0 %v56
  %140 = vmatprep.subr.mxu0 0.0
  %141 = vmatpush1.msra.mxu0 %v57
  %142 = vmatprep.subr.mxu0 0.0
  %143 = vmatpush1.msra.mxu0 %v58
  %144 = vmatprep.subr.mxu0 0.0
  %145 = vmatpush1.msra.mxu0 %v59
  %146 = vmatprep.subr.mxu0 0.0
  %147 = vmatpush1.msra.mxu0 %v60
  %148 = vmatprep.subr.mxu0 0.0
  %149 = vmatpush1.msra.mxu0 %v61
  %150 = vmatprep.subr.mxu0 0.0
  %151 = vmatpush1.msra.mxu0 %v62
  %152 = vmatprep.subr.mxu0 0.0
  %153 = vmatpush1.msra.mxu0 %v63
  %154 = vmatprep.subr.mxu0 0.0
  %155 = vmatpush1.msra.mxu0 %v64
  %156 = vmatprep.subr.mxu0 0.0
  %157 = vmatpush1.msra.mxu0 %v65
  %158 = vmatprep.subr.mxu0 0.0
  %159 = vmatpush1.msra.mxu0 0.0
  %160 = vmatprep.subr.mxu0 0.0
  %161 = vmatpush1.msra.mxu0 0.0
  %162 = vmatprep.subr.mxu0 0.0
  %163 = vmatpush1.msra.mxu0 0.0
  %164 = vmatprep.subr.mxu0 0.0
  %165 = vmatpush1.msra.mxu0 0.0
  %166 = vmatprep.subr.mxu0 0.0
  %167 = vmatpush1.msra.mxu0 0.0
  %168 = vmatprep.subr.mxu0 0.0
  %169 = vmatpush1.msra.mxu0 0.0
  %170 = vmatprep.subr.mxu0 0.0
  %171 = vmatpush1.msra.mxu0 0.0
  %172 = vmatprep.subr.mxu0 0.0
  %173 = vmatpush1.msra.mxu0 0.0
  %174 = vmatprep.subr.mxu0 0.0
  %175 = vmatpush1.msra.mxu0 0.0
  %176 = vmatprep.subr.mxu0 0.0
  %177 = vmatpush1.msra.mxu0 0.0
  %178 = vmatprep.subr.mxu0 0.0
  %179 = vmatpush1.msra.mxu0 0.0
  %180 = vmatprep.subr.mxu0 0.0
  %181 = vmatpush1.msra.mxu0 0.0
  %182 = vmatprep.subr.mxu0 0.0
  %183 = vmatpush1.msra.mxu0 0.0
  %184 = vmatprep.subr.mxu0 0.0
  %185 = vmatpush1.msra.mxu0 0.0
  %186 = vmatprep.mubr.f32.mxu0 %v75
  %187 = vmatmul.mubr.f32.gmra.mrb[0].mxu0 %v16
  %v188 = vpop.f32.mrb[0].mxu0
  %v189 = vadd.f32 %v71, %v188
  %v190 = vpop.f32.mrb[0].mxu0
  %191 = vmatprep.mubr.f32.mxu0 %v78
  %192 = vmatmul.mubr.f32.gmra.mrb[0].mxu0 %v18
  %v193 = vpop.f32.mrb[0].mxu0
  %v194 = vadd.f32 %v71, %v193
  %v195 = vpop.f32.mrb[0].mxu0
  %196 = vmatprep.mubr.f32.mxu0 %v81
  %197 = vmatmul.mubr.f32.gmra.mrb[0].mxu0 %v20
  %v198 = vpop.f32.mrb[0].mxu0
  %v199 = vadd.f32 %v71, %v198
  %v200 = vpop.f32.mrb[0].mxu0
  %201 = vmatprep.mubr.f32.mxu0 %v84
  %202 = vmatmul.mubr.f32.gmra.mrb[0].mxu0 %v22
  %v203 = vpop.f32.mrb[0].mxu0
  %v204 = vadd.f32 %v71, %v203
  %v205 = vpop.f32.mrb[0].mxu0
  %206 = vmatprep.mubr.f32.mxu0 %v87
  %207 = vmatmul.mubr.f32.gmra.mrb[0].mxu0 %v24
  %v208 = vpop.f32.mrb[0].mxu0
  %v209 = vadd.f32 %v71, %v208
  %v210 = vpop.f32.mrb[0].mxu0
  %211 = vmatprep.mubr.f32.mxu0 %v90
  %212 = vmatmul.mubr.f32.gmra.mrb[0].mxu0 %v26
  %v213 = vpop.f32.mrb[0].mxu0
  %v214 = vadd.f32 %v71, %v213
  %v215 = vpop.f32.mrb[0].mxu0
  %216 = vmatprep.mubr.f32.mxu0 %v93
  %217 = vmatmul.mubr.f32.gmra.mrb[0].mxu0 %v28
  %v218 = vpop.f32.mrb[0].mxu0
  %v219 = vadd.f32 %v71, %v218
  %v220 = vpop.f32.mrb[0].mxu0
  %221 = vmatprep.mubr.f32.mxu0 %v96
  %222 = vmatmul.mubr.f32.gmra.mrb[0].mxu0 %v30
  %v223 = vpop.f32.mrb[0].mxu0
  %v224 = vadd.f32 %v71, %v223
  %v225 = vpop.f32.mrb[0].mxu0
  %226 = vmatprep.mubr.f32.mxu0 %v99
  %227 = vmatmul.mubr.f32.gmra.mrb[0].mxu0 %v32
  %v228 = vpop.f32.mrb[0].mxu0
  %v229 = vadd.f32 %v71, %v228
  %v230 = vpop.f32.mrb[0].mxu0
  %231 = vmatprep.mubr.f32.mxu0 %v102
  %232 = vmatmul.mubr.f32.gmra.mrb[0].mxu0 %v34
  %v233 = vpop.f32.mrb[0].mxu0
  %v234 = vadd.f32 %v71, %v233
  %v235 = vpop.f32.mrb[0].mxu0
  %236 = vmatprep.mubr.f32.mxu0 %v105
  %237 = vmatmul.mubr.f32.gmra.mrb[0].mxu0 %v36
  %v238 = vpop.f32.mrb[0].mxu0
  %v239 = vadd.f32 %v71, %v238
  %v240 = vpop.f32.mrb[0].mxu0
  %241 = vmatprep.mubr.f32.mxu0 %v108
  %242 = vmatmul.mubr.f32.gmra.mrb[0].mxu0 %v38
  %v243 = vpop.f32.mrb[0].mxu0
  %v244 = vadd.f32 %v71, %v243
  %v245 = vpop.f32.mrb[0].mxu0
  %246 = vmatprep.mubr.f32.mxu0 %v111
  %247 = vmatmul.mubr.f32.gmra.mrb[0].mxu0 %v40
  %v248 = vpop.f32.mrb[0].mxu0
  %v249 = vadd.f32 %v71, %v248
  %v250 = vpop.f32.mrb[0].mxu0
  %251 = vmatprep.mubr.f32.mxu0 %v114
  %252 = vmatmul.mubr.f32.gmra.mrb[0].mxu0 %v42
  %v253 = vpop.f32.mrb[0].mxu0
  %v254 = vadd.f32 %v71, %v253
  %v255 = vpop.f32.mrb[0].mxu0
  %256 = vmatprep.mubr.f32.mxu0 %v117
  %257 = vmatmul.mubr.f32.gmra.mrb[0].mxu0 %v44
  %v258 = vpop.f32.mrb[0].mxu0
  %v259 = vadd.f32 %v71, %v258
  %v260 = vpop.f32.mrb[0].mxu0
  %261 = vmatprep.mubr.f32.mxu0 %v120
  %262 = vmatmul.mubr.f32.gmra.mrb[0].mxu0 %v46
  %v263 = vpop.f32.mrb[0].mxu0
  %v264 = vadd.f32 %v71, %v263
  %v265 = vpop.f32.mrb[0].mxu0
  %266 = vdwg.mxu0
  %267 = vst.msk [vmem:[%s3] sm:$0xff] %vm73, %v189
  %268 = vst.msk [vmem:[%s3 + $0x8] sm:$0xff] %vm73, %v194
  %269 = vst.msk [vmem:[%s3 + $0x10] sm:$0xff] %vm73, %v199
  %270 = vst.msk [vmem:[%s3 + $0x18] sm:$0xff] %vm73, %v204
  %271 = vst.msk [vmem:[%s3 + $0x20] sm:$0xff] %vm73, %v209
  %272 = vst.msk [vmem:[%s3 + $0x28] sm:$0xff] %vm73, %v214
  %273 = vst.msk [vmem:[%s3 + $0x30] sm:$0xff] %vm73, %v219
  %274 = vst.msk [vmem:[%s3 + $0x38] sm:$0xff] %vm73, %v224
  %275 = vst.msk [vmem:[%s3 + $0x40] sm:$0xff] %vm73, %v229
  %276 = vst.msk [vmem:[%s3 + $0x48] sm:$0xff] %vm73, %v234
  %277 = vst.msk [vmem:[%s3 + $0x50] sm:$0xff] %vm73, %v239
  %278 = vst.msk [vmem:[%s3 + $0x58] sm:$0xff] %vm73, %v244
  %279 = vst.msk [vmem:[%s3 + $0x60] sm:$0xff] %vm73, %v249
  %280 = vst.msk [vmem:[%s3 + $0x68] sm:$0xff] %vm73, %v254
  %281 = vst.msk [vmem:[%s3 + $0x70] sm:$0xff] %vm73, %v259
  %282 = vst.msk [vmem:[%s3 + $0x78] sm:$0xff] %vm73, %v264
  %v283 = vmul.f32 %v189, %v189
  %v284 = vmul.f32 %v194, %v194
  %v285 = vmul.f32 %v199, %v199
  %v286 = vmul.f32 %v204, %v204
  %v287 = vmul.f32 %v209, %v209
  %v288 = vmul.f32 %v214, %v214
  %v289 = vmul.f32 %v219, %v219
  %v290 = vmul.f32 %v224, %v224
  %v291 = vmul.f32 %v229, %v229
  %v292 = vmul.f32 %v234, %v234
  %v293 = vmul.f32 %v239, %v239
  %v294 = vmul.f32 %v244, %v244
  %v295 = vmul.f32 %v249, %v249
  %v296 = vmul.f32 %v254, %v254
  %v297 = vmul.f32 %v259, %v259
  %v298 = vmul.f32 %v264, %v264
  %315 = vrot.lane.b32.xlu0 %v283, 120
  %v316 = vpop.permute.xlu0 %315
  %317 = vrot.lane.b32.xlu0 %v284, 120
  %v318 = vpop.permute.xlu0 %317
  %319 = vrot.lane.b32.xlu0 %v285, 120
  %v320 = vpop.permute.xlu0 %319
  %321 = vrot.lane.b32.xlu0 %v286, 120
  %v322 = vpop.permute.xlu0 %321
  %323 = vrot.lane.b32.xlu0 %v287, 120
  %v324 = vpop.permute.xlu0 %323
  %325 = vrot.lane.b32.xlu0 %v288, 120
  %v326 = vpop.permute.xlu0 %325
  %327 = vrot.lane.b32.xlu0 %v289, 120
  %v328 = vpop.permute.xlu0 %327
  %329 = vrot.lane.b32.xlu0 %v290, 120
  %v330 = vpop.permute.xlu0 %329
  %331 = vrot.lane.b32.xlu0 %v291, 120
  %v332 = vpop.permute.xlu0 %331
  %333 = vrot.lane.b32.xlu0 %v292, 120
  %v334 = vpop.permute.xlu0 %333
  %335 = vrot.lane.b32.xlu0 %v293, 120
  %v336 = vpop.permute.xlu0 %335
  %337 = vrot.lane.b32.xlu0 %v294, 120
  %v338 = vpop.permute.xlu0 %337
  %339 = vrot.lane.b32.xlu0 %v295, 120
  %v340 = vpop.permute.xlu0 %339
  %341 = vrot.lane.b32.xlu0 %v296, 120
  %v342 = vpop.permute.xlu0 %341
  %343 = vrot.lane.b32.xlu0 %v297, 120
  %v344 = vpop.permute.xlu0 %343
  %345 = vrot.lane.b32.xlu0 %v298, 120
  %v346 = vpop.permute.xlu0 %345
  %v363 = vadd.f32 %v283, %v316
  %v364 = vadd.f32 %v284, %v318
  %v365 = vadd.f32 %v285, %v320
  %v366 = vadd.f32 %v286, %v322
  %v367 = vadd.f32 %v287, %v324
  %v368 = vadd.f32 %v288, %v326
  %v369 = vadd.f32 %v289, %v328
  %v370 = vadd.f32 %v290, %v330
  %v371 = vadd.f32 %v291, %v332
  %v372 = vadd.f32 %v292, %v334
  %v373 = vadd.f32 %v293, %v336
  %v374 = vadd.f32 %v294, %v338
  %v375 = vadd.f32 %v295, %v340
  %v376 = vadd.f32 %v296, %v342
  %v377 = vadd.f32 %v297, %v344
  %v378 = vadd.f32 %v298, %v346
  %v379 = vrsqrt.pop %v363
  %v380 = vmul.f32 %v363, %v379
  %vm381 = vcmp.eq.f32.partialorder %v363, inf
  %v382 = vsel %vm381, %v363, %v380
  %vm383 = vcmp.eq.f32.partialorder %v363, 0.0
  %v384 = vand.u32 %v363, 2147483648
  %v385 = vsel %vm383, %v384, %v382
  %v386 = vrsqrt.pop %v364
  %v387 = vmul.f32 %v364, %v386
  %vm388 = vcmp.eq.f32.partialorder %v364, inf
  %v389 = vsel %vm388, %v364, %v387
  %vm390 = vcmp.eq.f32.partialorder %v364, 0.0
  %v391 = vand.u32 %v364, 2147483648
  %v392 = vsel %vm390, %v391, %v389
  %v393 = vrsqrt.pop %v365
  %v394 = vmul.f32 %v365, %v393
  %vm395 = vcmp.eq.f32.partialorder %v365, inf
  %v396 = vsel %vm395, %v365, %v394
  %vm397 = vcmp.eq.f32.partialorder %v365, 0.0
  %v398 = vand.u32 %v365, 2147483648
  %v399 = vsel %vm397, %v398, %v396
  %v400 = vrsqrt.pop %v366
  %v401 = vmul.f32 %v366, %v400
  %vm402 = vcmp.eq.f32.partialorder %v366, inf
  %v403 = vsel %vm402, %v366, %v401
  %vm404 = vcmp.eq.f32.partialorder %v366, 0.0
  %v405 = vand.u32 %v366, 2147483648
  %v406 = vsel %vm404, %v405, %v403
  %v407 = vrsqrt.pop %v367
  %v408 = vmul.f32 %v367, %v407
  %vm409 = vcmp.eq.f32.partialorder %v367, inf
  %v410 = vsel %vm409, %v367, %v408
  %vm411 = vcmp.eq.f32.partialorder %v367, 0.0
  %v412 = vand.u32 %v367, 2147483648
  %v413 = vsel %vm411, %v412, %v410
  %v414 = vrsqrt.pop %v368
  %v415 = vmul.f32 %v368, %v414
  %vm416 = vcmp.eq.f32.partialorder %v368, inf
  %v417 = vsel %vm416, %v368, %v415
  %vm418 = vcmp.eq.f32.partialorder %v368, 0.0
  %v419 = vand.u32 %v368, 2147483648
  %v420 = vsel %vm418, %v419, %v417
  %v421 = vrsqrt.pop %v369
  %v422 = vmul.f32 %v369, %v421
  %vm423 = vcmp.eq.f32.partialorder %v369, inf
  %v424 = vsel %vm423, %v369, %v422
  %vm425 = vcmp.eq.f32.partialorder %v369, 0.0
  %v426 = vand.u32 %v369, 2147483648
  %v427 = vsel %vm425, %v426, %v424
  %v428 = vrsqrt.pop %v370
  %v429 = vmul.f32 %v370, %v428
  %vm430 = vcmp.eq.f32.partialorder %v370, inf
  %v431 = vsel %vm430, %v370, %v429
  %vm432 = vcmp.eq.f32.partialorder %v370, 0.0
  %v433 = vand.u32 %v370, 2147483648
  %v434 = vsel %vm432, %v433, %v431
  %v435 = vrsqrt.pop %v371
  %v436 = vmul.f32 %v371, %v435
  %vm437 = vcmp.eq.f32.partialorder %v371, inf
  %v438 = vsel %vm437, %v371, %v436
  %vm439 = vcmp.eq.f32.partialorder %v371, 0.0
  %v440 = vand.u32 %v371, 2147483648
  %v441 = vsel %vm439, %v440, %v438
  %v442 = vrsqrt.pop %v372
  %v443 = vmul.f32 %v372, %v442
  %vm444 = vcmp.eq.f32.partialorder %v372, inf
  %v445 = vsel %vm444, %v372, %v443
  %vm446 = vcmp.eq.f32.partialorder %v372, 0.0
  %v447 = vand.u32 %v372, 2147483648
  %v448 = vsel %vm446, %v447, %v445
  %v449 = vrsqrt.pop %v373
  %v450 = vmul.f32 %v373, %v449
  %vm451 = vcmp.eq.f32.partialorder %v373, inf
  %v452 = vsel %vm451, %v373, %v450
  %vm453 = vcmp.eq.f32.partialorder %v373, 0.0
  %v454 = vand.u32 %v373, 2147483648
  %v455 = vsel %vm453, %v454, %v452
  %v456 = vrsqrt.pop %v374
  %v457 = vmul.f32 %v374, %v456
  %vm458 = vcmp.eq.f32.partialorder %v374, inf
  %v459 = vsel %vm458, %v374, %v457
  %vm460 = vcmp.eq.f32.partialorder %v374, 0.0
  %v461 = vand.u32 %v374, 2147483648
  %v462 = vsel %vm460, %v461, %v459
  %v463 = vrsqrt.pop %v375
  %v464 = vmul.f32 %v375, %v463
  %vm465 = vcmp.eq.f32.partialorder %v375, inf
  %v466 = vsel %vm465, %v375, %v464
  %vm467 = vcmp.eq.f32.partialorder %v375, 0.0
  %v468 = vand.u32 %v375, 2147483648
  %v469 = vsel %vm467, %v468, %v466
  %v470 = vrsqrt.pop %v376
  %v471 = vmul.f32 %v376, %v470
  %vm472 = vcmp.eq.f32.partialorder %v376, inf
  %v473 = vsel %vm472, %v376, %v471
  %vm474 = vcmp.eq.f32.partialorder %v376, 0.0
  %v475 = vand.u32 %v376, 2147483648
  %v476 = vsel %vm474, %v475, %v473
  %v477 = vrsqrt.pop %v377
  %v478 = vmul.f32 %v377, %v477
  %vm479 = vcmp.eq.f32.partialorder %v377, inf
  %v480 = vsel %vm479, %v377, %v478
  %vm481 = vcmp.eq.f32.partialorder %v377, 0.0
  %v482 = vand.u32 %v377, 2147483648
  %v483 = vsel %vm481, %v482, %v480
  %v484 = vrsqrt.pop %v378
  %v485 = vmul.f32 %v378, %v484
  %vm486 = vcmp.eq.f32.partialorder %v378, inf
  %v487 = vsel %vm486, %v378, %v485
  %vm488 = vcmp.eq.f32.partialorder %v378, 0.0
  %v489 = vand.u32 %v378, 2147483648
  %v490 = vsel %vm488, %v489, %v487
  %vm491 = vcmask 64512
  %v492 = vsel %vm491, %v385, 0.0
  %v493 = vsel %vm491, %v392, 0.0
  %v494 = vadd.f32 %v492, %v493
  %v495 = vsel %vm491, %v399, 0.0
  %v496 = vadd.f32 %v494, %v495
  %v497 = vsel %vm491, %v406, 0.0
  %v498 = vadd.f32 %v496, %v497
  %v499 = vsel %vm491, %v413, 0.0
  %v500 = vadd.f32 %v498, %v499
  %v501 = vsel %vm491, %v420, 0.0
  %v502 = vadd.f32 %v500, %v501
  %v503 = vsel %vm491, %v427, 0.0
  %v504 = vadd.f32 %v502, %v503
  %v505 = vsel %vm491, %v434, 0.0
  %v506 = vadd.f32 %v504, %v505
  %v507 = vsel %vm491, %v441, 0.0
  %v508 = vadd.f32 %v506, %v507
  %v509 = vsel %vm491, %v448, 0.0
  %v510 = vadd.f32 %v508, %v509
  %v511 = vsel %vm491, %v455, 0.0
  %v512 = vadd.f32 %v510, %v511
  %v513 = vsel %vm491, %v462, 0.0
  %v514 = vadd.f32 %v512, %v513
  %v515 = vsel %vm491, %v469, 0.0
  %v516 = vadd.f32 %v514, %v515
  %v517 = vsel %vm491, %v476, 0.0
  %v518 = vadd.f32 %v516, %v517
  %v519 = vsel %vm491, %v483, 0.0
  %v520 = vadd.f32 %v518, %v519
  %v521 = vsel %vm491, %v490, 0.0
  %v522 = vadd.f32 %v520, %v521
  %v523 = vrot.slane %v522, 4
  %v524 = vadd.f32 %v522, %v523
  %v525 = vrot.slane %v524, 2
  %v526 = vadd.f32 %v524, %v525
  %v527 = vrot.slane %v526, 1
  %v528 = vadd.f32 %v526, %v527
  %v529 = vsel %vm491, %v363, 0.0
  %v530 = vsel %vm491, %v364, 0.0
  %v531 = vadd.f32 %v529, %v530
  %v532 = vsel %vm491, %v365, 0.0
  %v533 = vadd.f32 %v531, %v532
  %v534 = vsel %vm491, %v366, 0.0
  %v535 = vadd.f32 %v533, %v534
  %v536 = vsel %vm491, %v367, 0.0
  %v537 = vadd.f32 %v535, %v536
  %v538 = vsel %vm491, %v368, 0.0
  %v539 = vadd.f32 %v537, %v538
  %v540 = vsel %vm491, %v369, 0.0
  %v541 = vadd.f32 %v539, %v540
  %v542 = vsel %vm491, %v370, 0.0
  %v543 = vadd.f32 %v541, %v542
  %v544 = vsel %vm491, %v371, 0.0
  %v545 = vadd.f32 %v543, %v544
  %v546 = vsel %vm491, %v372, 0.0
  %v547 = vadd.f32 %v545, %v546
  %v548 = vsel %vm491, %v373, 0.0
  %v549 = vadd.f32 %v547, %v548
  %v550 = vsel %vm491, %v374, 0.0
  %v551 = vadd.f32 %v549, %v550
  %v552 = vsel %vm491, %v375, 0.0
  %v553 = vadd.f32 %v551, %v552
  %v554 = vsel %vm491, %v376, 0.0
  %v555 = vadd.f32 %v553, %v554
  %v556 = vsel %vm491, %v377, 0.0
  %v557 = vadd.f32 %v555, %v556
  %v558 = vsel %vm491, %v378, 0.0
  %v559 = vadd.f32 %v557, %v558
  %v560 = vrot.slane %v559, 4
  %v561 = vadd.f32 %v559, %v560
  %v562 = vrot.slane %v561, 2
  %v563 = vadd.f32 %v561, %v562
  %v564 = vrot.slane %v563, 1
  %v565 = vadd.f32 %v563, %v564
  %vm566 = vcmask 1040384
  %v567 = vsel %vm566, %v528, %v565
  %vm568 = vcmask 58368
  %569 = vst.msk [vmem:[%s4] sm:$0x3] %vm568, %v567
  // Predicated region
  $region14: #{down_forward.10} parent=0 // pred_check
    _
  $region15: #{down_forward.10} parent=0 // pred_check_branch
    %571 = sbr.rel (0) target = $region17
  $region16: #{down_forward.10} parent=0 // pred_region
    _
  $region17: #{down_forward.10} parent=0 // pred_fallthru
    _
  // Predicated region
  $region18: #{down_forward.10} parent=0 // pred_check
    _
  $region19: #{down_forward.10} parent=0 // pred_check_branch
    %573 = sbr.rel (0) target = $region21
  $region20: #{down_forward.10} parent=0 // pred_region
    _
  $region21: #{down_forward.10} parent=0 // pred_fallthru
    _
  // Predicated region
  $region22: #{down_forward.10} parent=0 // pred_check
    _
  $region23: #{down_forward.10} parent=0 // pred_check_branch
    %575 = sbr.rel (0) target = $region25
  $region24: #{down_forward.10} parent=0 // pred_region
    _
  $region25: #{down_forward.10} parent=0 // pred_fallthru
    _
  // Predicated region
  $region26: #{down_forward.10} parent=0 // pred_check
    _
  $region27: #{down_forward.10} parent=0 // pred_check_branch
    %577 = sbr.rel (0) target = $region29
  $region28: #{down_forward.10} parent=0 // pred_region
    _
  $region29: #{down_forward.10} parent=0 // pred_fallthru
    _

</llo_original>
